<compile_context>
chip_gen: v7x
topology: tpu7x:2x2x1
jax: 0.10.0
libtpu: 0.0.40
codegen_flags: <defaults>
</compile_context>

<pallas_src>
import functools

import jax
import jax.numpy as jnp
import numpy as np
from jax import lax
from jax.experimental import pallas as pl
from jax.experimental.pallas import tpu as pltpu


def _basic_block_kernel(x_ref, w1_ref, w2_ref, bn_ref, o_ref, pad_ref, *,
                        B, H, WC, compute_dtype):
    """One batch tile (B images, M = B*H rows) per grid step.

    x_ref   : (B*H, WC)    lane-dense activations (W and C folded on lanes)
    w*_ref  : (3, WC, WC)  per-kh block-Toeplitz weight slabs (W pad baked in)
    bn_ref  : (4, WC)      rows: [scale1, bias1, scale2, bias2] (folded BN)
    o_ref   : (B*H, WC)    output tile
    pad_ref : (B, H+2, WC) f32 scratch: per-image zero halo rows + interior
    """
    f32 = jnp.float32
    M = B * H

    # Per-image top/bottom zero halo rows (H-direction padding).  W-direction
    # padding is baked into the Toeplitz weight slabs, so there are no
    # left/right halo columns and interior stores are full-width at lane
    # offset 0.  Everything in the scratch is rewritten before being read on
    # every grid step, so this is safe under "parallel" grid semantics.
    zero_row = jnp.zeros((B, 1, WC), f32)
    pad_ref[:, 0:1, :] = zero_row
    pad_ref[:, H + 1:H + 2, :] = zero_row

    def conv3x3(w_ref):
        # Three accumulated dots, one per kh row shift; no wide LHS concat.
        lhs = pad_ref[:, 0:H, :].reshape(M, WC).astype(compute_dtype)
        acc = jnp.dot(lhs, w_ref[0], preferred_element_type=f32)
        for kh in (1, 2):
            lhs = pad_ref[:, kh:kh + H, :].reshape(M, WC).astype(compute_dtype)
            acc += jnp.dot(lhs, w_ref[kh], preferred_element_type=f32)
        return acc                                           # (M, WC), f32

    # --- conv1 -> folded BN1 -> ReLU
    pad_ref[:, 1:H + 1, :] = x_ref[...].astype(f32).reshape(B, H, WC)
    y1 = conv3x3(w1_ref)
    y1 = jnp.maximum(y1 * bn_ref[0:1, :] + bn_ref[1:2, :], 0.0)

    # --- conv2 -> folded BN2 -> + residual -> ReLU
    #     (Identity() shortcut is `x + 0.0`: exact no-op, dropped.)
    pad_ref[:, 1:H + 1, :] = y1.reshape(B, H, WC)
    y2 = conv3x3(w2_ref)
    out = y2 * bn_ref[2:3, :] + bn_ref[3:4, :] + x_ref[...].astype(f32)
    o_ref[...] = jnp.maximum(out, 0.0).astype(o_ref.dtype)


def _toeplitz_weights(w_oihw, W, compute_dtype):
    """(Cout, Cin, 3, 3) OIHW -> (3, W*Cin, W*Cout) per-kh block-Toeplitz slabs.

    Slab kh, row (w_in, c_in), column (w_out, c_out) holds
    weight[c_out, c_in, kh, w_in - w_out + 1] when |w_in - w_out| <= 1, else 0,
    i.e. the padding=1 along W is encoded directly in the weight matrix.
    """
    Cout, Cin = w_oihw.shape[0], w_oihw.shape[1]
    wt = jnp.transpose(w_oihw, (2, 3, 1, 0)).astype(jnp.float32)  # (kh,kw,cin,cout)
    wi = jnp.arange(W)[:, None]                                   # w_in
    wo = jnp.arange(W)[None, :]                                   # w_out
    kw = wi - wo + 1                                              # (W, W)
    valid = (kw >= 0) & (kw <= 2)
    blocks = jnp.take(wt, jnp.clip(kw, 0, 2), axis=1)             # (3,W,W,Cin,Cout)
    blocks = jnp.where(valid[None, :, :, None, None], blocks, 0.0)
    wmat = jnp.transpose(blocks, (0, 1, 3, 2, 4))                 # (3,wi,cin,wo,cout)
    return wmat.reshape(3, W * Cin, W * Cout).astype(compute_dtype)


def _fold_bn_params(bn1, bn2, eps, C, W):
    """Eval-mode BN -> (4, W*C) rows [scale1, bias1, scale2, bias2]."""
    def fold(bn):
        s = bn["gamma"] / jnp.sqrt(bn["var"] + eps)
        b = bn["beta"] - bn["mean"] * s
        return jnp.tile(s, W), jnp.tile(b, W)
    s1, b1 = fold(bn1)
    s2, b2 = fold(bn2)
    return jnp.stack([s1, b1, s2, b2]).astype(jnp.float32)


def basic_block_forward(x_nchw, w1_oihw, w2_oihw, bn1, bn2, *, eps=1e-5,
                        batch_tile=None, compute_dtype=jnp.bfloat16):
    """Pallas BasicBlock forward.  x_nchw: (N, C, H, W), stride=1, no downsample."""
    N, C, H, W = x_nchw.shape
    assert w1_oihw.shape == (C, C, 3, 3) and w2_oihw.shape == (C, C, 3, 3), (
        "only the stride=1, inplanes==planes, no-downsample BasicBlock path "
        "is implemented")
    WC = W * C

    if batch_tile is None:
        # Target M = batch_tile*H ~ 256 rows per grid step (fills the MXU and
        # amortizes per-step overhead) but keep >= 2 grid steps when possible
        # so both v7x TensorCores get work.
        batch_tile = max(1, min(N, 256 // H))
        while N % batch_tile:
            batch_tile -= 1
        if N // batch_tile < 2 and N >= 2:
            batch_tile = max(1, N // 2)
            while N % batch_tile:
                batch_tile -= 1
    assert N % batch_tile == 0
    Mt = batch_tile * H

    # NCHW -> lane-dense 2-D (N*H, W*C); no spatial padding in HBM.
    x2d = jnp.transpose(x_nchw, (0, 2, 3, 1)).reshape(N * H, WC)

    w1col = _toeplitz_weights(w1_oihw, W, compute_dtype)
    w2col = _toeplitz_weights(w2_oihw, W, compute_dtype)
    bn = _fold_bn_params(bn1, bn2, eps, C, W)

    kernel = functools.partial(_basic_block_kernel, B=batch_tile, H=H, WC=WC,
                               compute_dtype=compute_dtype)

    out2d = pl.pallas_call(
        kernel,
        out_shape=jax.ShapeDtypeStruct((N * H, WC), x_nchw.dtype),
        grid_spec=pltpu.PrefetchScalarGridSpec(
            num_scalar_prefetch=0,
            grid=(N // batch_tile,),
            in_specs=[
                pl.BlockSpec((Mt, WC), lambda n: (n, 0)),
                pl.BlockSpec((3, WC, WC), lambda n: (0, 0, 0)),
                pl.BlockSpec((3, WC, WC), lambda n: (0, 0, 0)),
                pl.BlockSpec((4, WC), lambda n: (0, 0)),
            ],
            out_specs=pl.BlockSpec((Mt, WC), lambda n: (n, 0)),
            scratch_shapes=[pltpu.VMEM((batch_tile, H + 2, WC), jnp.float32)],
        ),
        compiler_params=pltpu.CompilerParams(
            dimension_semantics=("parallel",)),   # batch tiles are independent
    )(x2d, w1col, w2col, bn)

    out = out2d.reshape(N, H, W, C)
    return jnp.transpose(out, (0, 3, 1, 2))       # back to NCHW


def _reference_forward(x, w1, w2, bn1, bn2, eps=1e-5):
    """Pure-JAX reference (lax conv, NCHW), eval-mode BN, mirrors the module."""
    dn = lax.conv_dimension_numbers(x.shape, w1.shape, ("NCHW", "OIHW", "NCHW"))

    def bn(o, p):
        s = p["gamma"] / jnp.sqrt(p["var"] + eps)
        b = p["beta"] - p["mean"] * s
        return o * s[None, :, None, None] + b[None, :, None, None]

    out = lax.conv_general_dilated(x, w1, (1, 1), ((1, 1), (1, 1)),
                                   dimension_numbers=dn)
    out = jax.nn.relu(bn(out, bn1))
    out = lax.conv_general_dilated(out, w2, (1, 1), ((1, 1), (1, 1)),
                                   dimension_numbers=dn)
    out = bn(out, bn2)
    out = out + x
    out = out + 0.0                # Identity() shortcut
    return jax.nn.relu(out)


if __name__ == "__main__":
    # Module-consistent shapes: inplanes = planes = 8, stride = 1.
    # W*C = 128 fills the 128-lane axis; N=32 with auto batch_tile=16 gives
    # M = 256 rows per grid step and a grid of 2 (keeps both v7x TCs busy).
    N, C, H, W = 32, 8, 16, 16
    key = jax.random.PRNGKey(0)
    kx, kw1, kw2, kg1, kb1, km1, kv1, kg2, kb2, km2, kv2 = jax.random.split(key, 11)

    x = jax.random.normal(kx, (N, C, H, W), jnp.float32)
    w1 = jax.random.normal(kw1, (C, C, 3, 3), jnp.float32) * 0.1
    w2 = jax.random.normal(kw2, (C, C, 3, 3), jnp.float32) * 0.1
    bn1 = {
        "gamma": jax.random.normal(kg1, (C,), jnp.float32) * 0.1 + 1.0,
        "beta": jax.random.normal(kb1, (C,), jnp.float32) * 0.1,
        "mean": jax.random.normal(km1, (C,), jnp.float32) * 0.1,
        "var": jax.random.uniform(kv1, (C,), jnp.float32, 0.5, 1.5),
    }
    bn2 = {
        "gamma": jax.random.normal(kg2, (C,), jnp.float32) * 0.1 + 1.0,
        "beta": jax.random.normal(kb2, (C,), jnp.float32) * 0.1,
        "mean": jax.random.normal(km2, (C,), jnp.float32) * 0.1,
        "var": jax.random.uniform(kv2, (C,), jnp.float32, 0.5, 1.5),
    }

    ref = jax.block_until_ready(_reference_forward(x, w1, w2, bn1, bn2))

    # f32 compute path: tight check against the f32 reference.
    out_f32 = jax.block_until_ready(
        basic_block_forward(x, w1, w2, bn1, bn2, compute_dtype=jnp.float32))
    np.testing.assert_allclose(np.asarray(out_f32), np.asarray(ref),
                               rtol=1e-3, atol=1e-3)

    # bf16 MXU path (default, fast on v6e/v7x): looser tolerance is expected
    # quantization error from rounding weights/activations to bf16.
    out_bf16 = jax.block_until_ready(basic_block_forward(x, w1, w2, bn1, bn2))
    np.testing.assert_allclose(np.asarray(out_bf16), np.asarray(ref),
                               rtol=5e-2, atol=5e-2)

    print("KERNEL_OK")
</pallas_src>

<mosaic_0001>
module attributes {stable_mosaic.version = 11 : i64} {
  func.func @_basic_block_kernel(%arg0: i32, %arg1: memref<256x128xf32, #tpu.memory_space<vmem>>, %arg2: memref<3x128x128xf32, #tpu.memory_space<vmem>>, %arg3: memref<3x128x128xf32, #tpu.memory_space<vmem>>, %arg4: memref<4x128xf32, #tpu.memory_space<vmem>>, %arg5: memref<256x128xf32, #tpu.memory_space<vmem>>, %arg6: memref<16x18x128xf32, #tpu.memory_space<vmem>>) attributes {dimension_semantics = [#tpu.dimension_semantics<parallel>], iteration_bounds = array<i64: 2>, scalar_prefetch = 0 : i64, scratch_operands = 1 : i64, tpu.core_type = #tpu.core_type<tc>, window_params = [{transform_indices = @transform_0, window_bounds = array<i64: 256, 128>}, {pipeline_mode = #tpu.pipeline_mode<synchronous>, transform_indices = @transform_1, window_bounds = array<i64: 3, 128, 128>}, {pipeline_mode = #tpu.pipeline_mode<synchronous>, transform_indices = @transform_2, window_bounds = array<i64: 3, 128, 128>}, {pipeline_mode = #tpu.pipeline_mode<synchronous>, transform_indices = @transform_3, window_bounds = array<i64: 4, 128>}, {transform_indices = @transform_4, window_bounds = array<i64: 256, 128>}]} {
    %cst = arith.constant 0.000000e+00 : f32
    %0 = vector.broadcast %cst : f32 to vector<16x1x128xf32>
    %c0 = arith.constant 0 : index
    %c0_0 = arith.constant 0 : index
    %c0_1 = arith.constant 0 : index
    %1 = vector.load %arg6[%c0, %c0_0, %c0_1] : memref<16x18x128xf32, #tpu.memory_space<vmem>>, vector<16x1x128xf32>
    tpu.vector_store %arg6[%c0, %c0_0, %c0_1], %0 {strides = array<i32>} : memref<16x18x128xf32, #tpu.memory_space<vmem>>, vector<16x1x128xf32>,
    %c0_2 = arith.constant 0 : index
    %c17 = arith.constant 17 : index
    %c0_3 = arith.constant 0 : index
    %2 = vector.load %arg6[%c0_2, %c17, %c0_3] : memref<16x18x128xf32, #tpu.memory_space<vmem>>, vector<16x1x128xf32>
    tpu.vector_store %arg6[%c0_2, %c17, %c0_3], %0 {strides = array<i32>} : memref<16x18x128xf32, #tpu.memory_space<vmem>>, vector<16x1x128xf32>,
    %c0_4 = arith.constant 0 : index
    %c0_5 = arith.constant 0 : index
    %3 = vector.load %arg1[%c0_4, %c0_5] : memref<256x128xf32, #tpu.memory_space<vmem>>, vector<256x128xf32>
    %4 = vector.shape_cast %3 : vector<256x128xf32> to vector<16x16x128xf32>
    %c0_6 = arith.constant 0 : index
    %c1 = arith.constant 1 : index
    %c0_7 = arith.constant 0 : index
    %5 = vector.load %arg6[%c0_6, %c1, %c0_7] : memref<16x18x128xf32, #tpu.memory_space<vmem>>, vector<16x16x128xf32>
    tpu.vector_store %arg6[%c0_6, %c1, %c0_7], %4 {strides = array<i32>} : memref<16x18x128xf32, #tpu.memory_space<vmem>>, vector<16x16x128xf32>,
    %c0_8 = arith.constant 0 : index
    %c0_9 = arith.constant 0 : index
    %c0_10 = arith.constant 0 : index
    %6 = vector.load %arg6[%c0_8, %c0_9, %c0_10] : memref<16x18x128xf32, #tpu.memory_space<vmem>>, vector<16x16x128xf32>
    %7 = vector.shape_cast %6 : vector<16x16x128xf32> to vector<256x128xf32>
    %c0_11 = arith.constant 0 : index
    %c0_12 = arith.constant 0 : index
    %c0_13 = arith.constant 0 : index
    %8 = vector.load %arg2[%c0_11, %c0_12, %c0_13] : memref<3x128x128xf32, #tpu.memory_space<vmem>>, vector<1x128x128xf32>
    %9 = vector.shape_cast %8 : vector<1x128x128xf32> to vector<128x128xf32>
    %cst_14 = arith.constant dense<0.000000e+00> : vector<256x128xf32>
    %10 = tpu.matmul %7, %9, %cst_14 {dimension_numbers = #tpu.dot_dimension_numbers<[1], [0], [0], [1], [0, 0, 1, 1], [], []>} : vector<256x128xf32>, vector<128x128xf32>, vector<256x128xf32> -> vector<256x128xf32>
    %c0_15 = arith.constant 0 : index
    %c1_16 = arith.constant 1 : index
    %c0_17 = arith.constant 0 : index
    %11 = vector.load %arg6[%c0_15, %c1_16, %c0_17] : memref<16x18x128xf32, #tpu.memory_space<vmem>>, vector<16x16x128xf32>
    %12 = vector.shape_cast %11 : vector<16x16x128xf32> to vector<256x128xf32>
    %c1_18 = arith.constant 1 : index
    %c0_19 = arith.constant 0 : index
    %c0_20 = arith.constant 0 : index
    %13 = vector.load %arg2[%c1_18, %c0_19, %c0_20] : memref<3x128x128xf32, #tpu.memory_space<vmem>>, vector<1x128x128xf32>
    %14 = vector.shape_cast %13 : vector<1x128x128xf32> to vector<128x128xf32>
    %cst_21 = arith.constant dense<0.000000e+00> : vector<256x128xf32>
    %15 = tpu.matmul %12, %14, %cst_21 {dimension_numbers = #tpu.dot_dimension_numbers<[1], [0], [0], [1], [0, 0, 1, 1], [], []>} : vector<256x128xf32>, vector<128x128xf32>, vector<256x128xf32> -> vector<256x128xf32>
    %16 = arith.addf %10, %15 : vector<256x128xf32>
    %c0_22 = arith.constant 0 : index
    %c2 = arith.constant 2 : index
    %c0_23 = arith.constant 0 : index
    %17 = vector.load %arg6[%c0_22, %c2, %c0_23] : memref<16x18x128xf32, #tpu.memory_space<vmem>>, vector<16x16x128xf32>
    %18 = vector.shape_cast %17 : vector<16x16x128xf32> to vector<256x128xf32>
    %c2_24 = arith.constant 2 : index
    %c0_25 = arith.constant 0 : index
    %c0_26 = arith.constant 0 : index
    %19 = vector.load %arg2[%c2_24, %c0_25, %c0_26] : memref<3x128x128xf32, #tpu.memory_space<vmem>>, vector<1x128x128xf32>
    %20 = vector.shape_cast %19 : vector<1x128x128xf32> to vector<128x128xf32>
    %cst_27 = arith.constant dense<0.000000e+00> : vector<256x128xf32>
    %21 = tpu.matmul %18, %20, %cst_27 {dimension_numbers = #tpu.dot_dimension_numbers<[1], [0], [0], [1], [0, 0, 1, 1], [], []>} : vector<256x128xf32>, vector<128x128xf32>, vector<256x128xf32> -> vector<256x128xf32>
    %22 = arith.addf %16, %21 : vector<256x128xf32>
    %c0_28 = arith.constant 0 : index
    %c0_29 = arith.constant 0 : index
    %23 = vector.load %arg4[%c0_28, %c0_29] : memref<4x128xf32, #tpu.memory_space<vmem>>, vector<1x128xf32>
    %24 = vector.broadcast %23 : vector<1x128xf32> to vector<256x128xf32>
    %25 = arith.mulf %22, %24 : vector<256x128xf32>
    %c1_30 = arith.constant 1 : index
    %c0_31 = arith.constant 0 : index
    %26 = vector.load %arg4[%c1_30, %c0_31] : memref<4x128xf32, #tpu.memory_space<vmem>>, vector<1x128xf32>
    %27 = vector.broadcast %26 : vector<1x128xf32> to vector<256x128xf32>
    %28 = arith.addf %25, %27 : vector<256x128xf32>
    %cst_32 = arith.constant 0.000000e+00 : f32
    %29 = vector.broadcast %cst_32 : f32 to vector<256x128xf32>
    %30 = arith.maximumf %28, %29 : vector<256x128xf32>
    %31 = vector.shape_cast %30 : vector<256x128xf32> to vector<16x16x128xf32>
    %c0_33 = arith.constant 0 : index
    %c1_34 = arith.constant 1 : index
    %c0_35 = arith.constant 0 : index
    %32 = vector.load %arg6[%c0_33, %c1_34, %c0_35] : memref<16x18x128xf32, #tpu.memory_space<vmem>>, vector<16x16x128xf32>
    tpu.vector_store %arg6[%c0_33, %c1_34, %c0_35], %31 {strides = array<i32>} : memref<16x18x128xf32, #tpu.memory_space<vmem>>, vector<16x16x128xf32>,
    %c0_36 = arith.constant 0 : index
    %c0_37 = arith.constant 0 : index
    %c0_38 = arith.constant 0 : index
    %33 = vector.load %arg6[%c0_36, %c0_37, %c0_38] : memref<16x18x128xf32, #tpu.memory_space<vmem>>, vector<16x16x128xf32>
    %34 = vector.shape_cast %33 : vector<16x16x128xf32> to vector<256x128xf32>
    %c0_39 = arith.constant 0 : index
    %c0_40 = arith.constant 0 : index
    %c0_41 = arith.constant 0 : index
    %35 = vector.load %arg3[%c0_39, %c0_40, %c0_41] : memref<3x128x128xf32, #tpu.memory_space<vmem>>, vector<1x128x128xf32>
    %36 = vector.shape_cast %35 : vector<1x128x128xf32> to vector<128x128xf32>
    %cst_42 = arith.constant dense<0.000000e+00> : vector<256x128xf32>
    %37 = tpu.matmul %34, %36, %cst_42 {dimension_numbers = #tpu.dot_dimension_numbers<[1], [0], [0], [1], [0, 0, 1, 1], [], []>} : vector<256x128xf32>, vector<128x128xf32>, vector<256x128xf32> -> vector<256x128xf32>
    %c0_43 = arith.constant 0 : index
    %c1_44 = arith.constant 1 : index
    %c0_45 = arith.constant 0 : index
    %38 = vector.load %arg6[%c0_43, %c1_44, %c0_45] : memref<16x18x128xf32, #tpu.memory_space<vmem>>, vector<16x16x128xf32>
    %39 = vector.shape_cast %38 : vector<16x16x128xf32> to vector<256x128xf32>
    %c1_46 = arith.constant 1 : index
    %c0_47 = arith.constant 0 : index
    %c0_48 = arith.constant 0 : index
    %40 = vector.load %arg3[%c1_46, %c0_47, %c0_48] : memref<3x128x128xf32, #tpu.memory_space<vmem>>, vector<1x128x128xf32>
    %41 = vector.shape_cast %40 : vector<1x128x128xf32> to vector<128x128xf32>
    %cst_49 = arith.constant dense<0.000000e+00> : vector<256x128xf32>
    %42 = tpu.matmul %39, %41, %cst_49 {dimension_numbers = #tpu.dot_dimension_numbers<[1], [0], [0], [1], [0, 0, 1, 1], [], []>} : vector<256x128xf32>, vector<128x128xf32>, vector<256x128xf32> -> vector<256x128xf32>
    %43 = arith.addf %37, %42 : vector<256x128xf32>
    %c0_50 = arith.constant 0 : index
    %c2_51 = arith.constant 2 : index
    %c0_52 = arith.constant 0 : index
    %44 = vector.load %arg6[%c0_50, %c2_51, %c0_52] : memref<16x18x128xf32, #tpu.memory_space<vmem>>, vector<16x16x128xf32>
    %45 = vector.shape_cast %44 : vector<16x16x128xf32> to vector<256x128xf32>
    %c2_53 = arith.constant 2 : index
    %c0_54 = arith.constant 0 : index
    %c0_55 = arith.constant 0 : index
    %46 = vector.load %arg3[%c2_53, %c0_54, %c0_55] : memref<3x128x128xf32, #tpu.memory_space<vmem>>, vector<1x128x128xf32>
    %47 = vector.shape_cast %46 : vector<1x128x128xf32> to vector<128x128xf32>
    %cst_56 = arith.constant dense<0.000000e+00> : vector<256x128xf32>
    %48 = tpu.matmul %45, %47, %cst_56 {dimension_numbers = #tpu.dot_dimension_numbers<[1], [0], [0], [1], [0, 0, 1, 1], [], []>} : vector<256x128xf32>, vector<128x128xf32>, vector<256x128xf32> -> vector<256x128xf32>
    %49 = arith.addf %43, %48 : vector<256x128xf32>
    %c2_57 = arith.constant 2 : index
    %c0_58 = arith.constant 0 : index
    %50 = vector.load %arg4[%c2_57, %c0_58] : memref<4x128xf32, #tpu.memory_space<vmem>>, vector<1x128xf32>
    %51 = vector.broadcast %50 : vector<1x128xf32> to vector<256x128xf32>
    %52 = arith.mulf %49, %51 : vector<256x128xf32>
    %c3 = arith.constant 3 : index
    %c0_59 = arith.constant 0 : index
    %53 = vector.load %arg4[%c3, %c0_59] : memref<4x128xf32, #tpu.memory_space<vmem>>, vector<1x128xf32>
    %54 = vector.broadcast %53 : vector<1x128xf32> to vector<256x128xf32>
    %55 = arith.addf %52, %54 : vector<256x128xf32>
    %c0_60 = arith.constant 0 : index
    %c0_61 = arith.constant 0 : index
    %56 = vector.load %arg1[%c0_60, %c0_61] : memref<256x128xf32, #tpu.memory_space<vmem>>, vector<256x128xf32>
    %57 = arith.addf %55, %56 : vector<256x128xf32>
    %cst_62 = arith.constant 0.000000e+00 : f32
    %58 = vector.broadcast %cst_62 : f32 to vector<256x128xf32>
    %59 = arith.maximumf %57, %58 : vector<256x128xf32>
    %c0_63 = arith.constant 0 : index
    %c0_64 = arith.constant 0 : index
    %60 = vector.load %arg5[%c0_63, %c0_64] : memref<256x128xf32, #tpu.memory_space<vmem>>, vector<256x128xf32>
    tpu.vector_store %arg5[%c0_63, %c0_64], %59 {strides = array<i32>} : memref<256x128xf32, #tpu.memory_space<vmem>>, vector<256x128xf32>,
    return
  }
  func.func @transform_0(%arg0: i32) -> (i32, i32) {
    %c0_i32 = arith.constant 0 : i32
    %c0_i32_0 = arith.constant 0 : i32
    return %arg0, %c0_i32 : i32, i32
  }
  func.func @transform_1(%arg0: i32) -> (i32, i32, i32) {
    %c0_i32 = arith.constant 0 : i32
    %c0_i32_0 = arith.constant 0 : i32
    %c0_i32_1 = arith.constant 0 : i32
    %c0_i32_2 = arith.constant 0 : i32
    return %c0_i32, %c0_i32_0, %c0_i32_1 : i32, i32, i32
  }
  func.func @transform_2(%arg0: i32) -> (i32, i32, i32) {
    %c0_i32 = arith.constant 0 : i32
    %c0_i32_0 = arith.constant 0 : i32
    %c0_i32_1 = arith.constant 0 : i32
    %c0_i32_2 = arith.constant 0 : i32
    return %c0_i32, %c0_i32_0, %c0_i32_1 : i32, i32, i32
  }
  func.func @transform_3(%arg0: i32) -> (i32, i32) {
    %c0_i32 = arith.constant 0 : i32
    %c0_i32_0 = arith.constant 0 : i32
    %c0_i32_1 = arith.constant 0 : i32
    return %c0_i32, %c0_i32_0 : i32, i32
  }
  func.func @transform_4(%arg0: i32) -> (i32, i32) {
    %c0_i32 = arith.constant 0 : i32
    %c0_i32_0 = arith.constant 0 : i32
    return %arg0, %c0_i32 : i32, i32
  }
}

</mosaic_0001>

<llo_original>
// kernel: tpu_custom_call.1
$region0: #{tpu_custom_call.1}
  #allocation0 [shape = 'u32[]', space=smem, size = 0x4, offset = 0x4, fixed_abs, tag = 'smem constant byte address 0x4 - core index']
  #allocation1 [shape = 'u32[144,128]{1,0:T(1,128)}', space=vmem, size = 0x12000, scoped, tag = 'internal scratch']
  #allocation2 [shape = 'f32[16,18,128]{2,1,0:T(8,128)}', space=vmem, size = 0x30000, scoped, tag = 'scratch operand']
  %s0 = inlined_call_operand.hbm [shape: f32[512,128], index: 0, kind: input, shape index: {}]
  %s1 = inlined_call_operand.hbm [shape: f32[3,128,128], index: 1, kind: input, shape index: {}]
  %s2 = inlined_call_operand.hbm [shape: f32[3,128,128], index: 2, kind: input, shape index: {}]
  %s3 = inlined_call_operand.vmem [shape: f32[4,128], index: 3, kind: input, shape index: {}]
  %s4 = inlined_call_operand.hbm [shape: f32[512,128], index: 4, kind: output, shape index: {}]
  %s5 = sld [smem:[#allocation0]]
  $region61: #{tpu_custom_call.1} parent=0
    _
  %s7 = ssub.s32 1, %s5
  %s8 = scalar_select 0, %s7, %s5
  $region1: #{tpu_custom_call.1} parent=0
    #allocation3 [shape = 'u8[262144]{0}', space=vmem, size = 0x40000, scoped, tag = 'input window, operand 0']
    #allocation4 [shape = 's32[2]{0}', space=sflag, size = 0x8, scoped, tag = 'scoped memory for tpu_custom_call.1']
    #allocation5 [shape = 's32[2]{0}', space=sflag, size = 0x8, scoped, tag = 'scoped memory for tpu_custom_call.1']
    #allocation6 [shape = 'u8[196608]{0}', space=vmem, size = 0x30000, scoped, tag = 'input window, operand 1, single buffered']
    #allocation7 [shape = 's32[1]{0}', space=sflag, size = 0x4, scoped, tag = 'scoped memory for tpu_custom_call.1']
    #allocation8 [shape = 'u8[196608]{0}', space=vmem, size = 0x30000, scoped, tag = 'input window, operand 2, single buffered']
    #allocation9 [shape = 'u8[262144]{0}', space=vmem, size = 0x40000, scoped, tag = 'output window, operand 0']
    %9 = vsyncpa [#allocation4], 0
    %s10 = scalar_lea.sflag [#allocation4], 1
    %11 = vsyncpa %s10, 0
    %12 = vsyncpa [#allocation7], 0
    %13 = vsyncpa [#allocation5], 0
    %s14 = scalar_lea.sflag [#allocation5], 1
    %15 = vsyncpa %s14, 0
    loop: start=0, step=1, limit=4
    $region2: #{tpu_custom_call.1} parent=1 // loop_pre_header
      _
    $region3: #{tpu_custom_call.1} parent=1 // loop_header
      %s17 = sphi 0, %s21
      %p18 = scmp.ge.s32.totalorder %s17, 4
      %s27 = sphi 0, %s29
      %s30 = sphi 0, %s27
      %s31 = sphi 0, %s30
      %s47 = sphi 0, %s31
      %s51 = sphi 0, %s51
      %s53 = sphi 0, %s51
      %s54 = sphi 0, %s53
      %s68 = sphi 0, %s54
      %s72 = sphi 0, %s72
      %s74 = sphi 0, %s72
      %s75 = sphi 0, %s74
      %s89 = sphi 0, %s75
      %s93 = sphi 0, %s93
      %s95 = sphi 0, %s93
      %s96 = sphi 0, %s95
      %s110 = sphi 0, %s96
      %s116 = sphi 0, %s118
      %s119 = sphi 0, %s116
      %s120 = sphi 0, %s119
      %s136 = sphi 0, %s120
    $region4: #{tpu_custom_call.1} parent=1 // loop_header_branch
      %20 = sbr.rel (%p18) target = $region8
    $region5: #{tpu_custom_call.1} parent=1 // loop_body
      %s22 = ssub.s32 %s17, 1
      %s23 = ssub.s32 %s17, 2
      %s24 = sadd.s32 %s17, 1
      %s25 = ssub.s32 %s17, %s24
      %p26 = scmp.eq.s32.totalorder %s25, 0
      %s28 = sadd.s32 %s27, 1
      %s29 = scalar_select %p26, %s27, %s28
      %p32 = pneg %p26
      %p33 = scmp.eq.s32.totalorder %s17, 1
      %p34 = por %p32, %p33
      %p35 = scmp.ne.s32.totalorder %s27, %s30
      %p36 = scmp.eq.s32.totalorder %s17, 0
      %p37 = por %p35, %p36
      %p38 = scmp.ne.s32.totalorder %s27, %s30
      %p39 = scmp.eq.s32.totalorder %s22, 1
      %p40 = por %p38, %p39
      %p41 = scmp.ne.s32.totalorder %s30, %s31
      %p42 = scmp.eq.s32.totalorder %s22, 0
      %p43 = por %p41, %p42
      %p44 = scmp.ne.s32.totalorder %s30, %s31
      %p45 = scmp.eq.s32.totalorder %s23, 1
      %p46 = por %p44, %p45
      %p48 = scmp.ne.s32.totalorder %s31, %s47
      %p49 = scmp.eq.s32.totalorder %s23, 0
      %p50 = por %p48, %p49
      %s52 = sadd.s32 %s51, 1
      %p55 = scmp.eq.s32.totalorder %s17, 1
      %p56 = scmp.ne.s32.totalorder %s51, %s53
      %p57 = scmp.eq.s32.totalorder %s17, 0
      %p58 = por %p56, %p57
      %p59 = scmp.ne.s32.totalorder %s51, %s53
      %p60 = scmp.eq.s32.totalorder %s22, 1
      %p61 = por %p59, %p60
      %p62 = scmp.ne.s32.totalorder %s53, %s54
      %p63 = scmp.eq.s32.totalorder %s22, 0
      %p64 = por %p62, %p63
      %p65 = scmp.ne.s32.totalorder %s53, %s54
      %p66 = scmp.eq.s32.totalorder %s23, 1
      %p67 = por %p65, %p66
      %p69 = scmp.ne.s32.totalorder %s54, %s68
      %p70 = scmp.eq.s32.totalorder %s23, 0
      %p71 = por %p69, %p70
      %s73 = sadd.s32 %s72, 1
      %p76 = scmp.eq.s32.totalorder %s17, 1
      %p77 = scmp.ne.s32.totalorder %s72, %s74
      %p78 = scmp.eq.s32.totalorder %s17, 0
      %p79 = por %p77, %p78
      %p80 = scmp.ne.s32.totalorder %s72, %s74
      %p81 = scmp.eq.s32.totalorder %s22, 1
      %p82 = por %p80, %p81
      %p83 = scmp.ne.s32.totalorder %s74, %s75
      %p84 = scmp.eq.s32.totalorder %s22, 0
      %p85 = por %p83, %p84
      %p86 = scmp.ne.s32.totalorder %s74, %s75
      %p87 = scmp.eq.s32.totalorder %s23, 1
      %p88 = por %p86, %p87
      %p90 = scmp.ne.s32.totalorder %s75, %s89
      %p91 = scmp.eq.s32.totalorder %s23, 0
      %p92 = por %p90, %p91
      %s94 = sadd.s32 %s93, 1
      %p97 = scmp.eq.s32.totalorder %s17, 1
      %p98 = scmp.ne.s32.totalorder %s93, %s95
      %p99 = scmp.eq.s32.totalorder %s17, 0
      %p100 = por %p98, %p99
      %p101 = scmp.ne.s32.totalorder %s93, %s95
      %p102 = scmp.eq.s32.totalorder %s22, 1
      %p103 = por %p101, %p102
      %p104 = scmp.ne.s32.totalorder %s95, %s96
      %p105 = scmp.eq.s32.totalorder %s22, 0
      %p106 = por %p104, %p105
      %p107 = scmp.ne.s32.totalorder %s95, %s96
      %p108 = scmp.eq.s32.totalorder %s23, 1
      %p109 = por %p107, %p108
      %p111 = scmp.ne.s32.totalorder %s96, %s110
      %p112 = scmp.eq.s32.totalorder %s23, 0
      %p113 = por %p111, %p112
      %s114 = ssub.s32 %s17, %s24
      %p115 = scmp.eq.s32.totalorder %s114, 0
      %s117 = sadd.s32 %s116, 1
      %s118 = scalar_select %p115, %s116, %s117
      %p121 = pneg %p115
      %p122 = scmp.eq.s32.totalorder %s17, 1
      %p123 = por %p121, %p122
      %p124 = scmp.ne.s32.totalorder %s116, %s119
      %p125 = scmp.eq.s32.totalorder %s17, 0
      %p126 = por %p124, %p125
      %p127 = scmp.ne.s32.totalorder %s116, %s119
      %p128 = scmp.eq.s32.totalorder %s22, 1
      %p129 = por %p127, %p128
      %p130 = scmp.ne.s32.totalorder %s119, %s120
      %p131 = scmp.eq.s32.totalorder %s22, 0
      %p132 = por %p130, %p131
      %p133 = scmp.ne.s32.totalorder %s119, %s120
      %p134 = scmp.eq.s32.totalorder %s23, 1
      %p135 = por %p133, %p134
      %p137 = scmp.ne.s32.totalorder %s120, %s136
      %p138 = scmp.eq.s32.totalorder %s23, 0
      %p139 = por %p137, %p138
      %p140 = scmp.le.s32.totalorder 1, %s17
      %p141 = scmp.lt.s32.totalorder %s17, 3
      %p142 = pnand %p140, %p141
      %p143 = pneg %p142
      // Predicated region
      $region9: #{tpu_custom_call.1} parent=5 // pred_check
        _
      $region10: #{tpu_custom_call.1} parent=5 // pred_check_branch
        %145 = sbr.rel (%p142) target = $region12
      $region11: #{tpu_custom_call.1} parent=5 // pred_region
        %s146 = ssub.s32 %s17, 1
        // Predicated region
        $region13: #{tpu_custom_call.1} parent=11 // pred_check
          %p147 = pneg %p64
        $region14: #{tpu_custom_call.1} parent=11 // pred_check_branch
          %149 = sbr.rel (%p147) target = $region16
        $region15: #{tpu_custom_call.1} parent=11 // pred_region
          %s151 = ssub.s32 6144, 6144
          %152 = vsyncadd [#allocation7], %s151
          %s153 = sshll.u32 [#allocation6], 4
          %s154 = int_to_ptr.vmem [resolvable:$true] %s153
          %159 = dma.hbm_to_vmem [thread:$0]  %s1, 6144, %s154, [#allocation7], 128, 128, 8
        $region16: #{tpu_custom_call.1} parent=11 // pred_fallthru
          _
        // Predicated region
        $region17: #{tpu_custom_call.1} parent=11 // pred_check
          %p160 = pneg %p85
        $region18: #{tpu_custom_call.1} parent=11 // pred_check_branch
          %162 = sbr.rel (%p160) target = $region20
        $region19: #{tpu_custom_call.1} parent=11 // pred_region
          %s164 = ssub.s32 6144, 6144
          %165 = vsyncadd [#allocation7], %s164
          %s166 = sshll.u32 [#allocation8], 4
          %s167 = int_to_ptr.vmem [resolvable:$true] %s166
          %172 = dma.hbm_to_vmem [thread:$0]  %s2, 6144, %s167, [#allocation7], 128, 128, 8
        $region20: #{tpu_custom_call.1} parent=11 // pred_fallthru
          _
        // Predicated region
        $region21: #{tpu_custom_call.1} parent=11 // pred_check
          %p173 = pneg %p106
        $region22: #{tpu_custom_call.1} parent=11 // pred_check_branch
          %175 = sbr.rel (%p173) target = $region24
        $region23: #{tpu_custom_call.1} parent=11 // pred_region
          _
        $region24: #{tpu_custom_call.1} parent=11 // pred_fallthru
          _
      $region12: #{tpu_custom_call.1} parent=5 // pred_fallthru
        _
      %p176 = scmp.lt.s32.totalorder %s17, 2
      // Predicated region
      $region25: #{tpu_custom_call.1} parent=5 // pred_check
        %p177 = pneg %p176
      $region26: #{tpu_custom_call.1} parent=5 // pred_check_branch
        %179 = sbr.rel (%p177) target = $region28
      $region27: #{tpu_custom_call.1} parent=5 // pred_region
        // Predicated region
        $region29: #{tpu_custom_call.1} parent=27 // pred_check
          %p180 = pneg %p37
        $region30: #{tpu_custom_call.1} parent=27 // pred_check_branch
          %182 = sbr.rel (%p180) target = $region32
        $region31: #{tpu_custom_call.1} parent=27 // pred_region
          %s183 = sand.u32 %s27, 1
          %s184 = scalar_lea.sflag [#allocation4], %s183
          %s185 = sand.u32 %s27, 1
          %s186 = smul.addr %s185, 256
          %s187 = scalar_lea.vmem [#allocation3], %s186
          %s188 = smul.u32 32, %s17
          %s190 = ssub.s32 4096, 4096
          %191 = vsyncadd %s184, %s190
          %s192 = smul.addr %s188, 128
          %s193 = scalar_lea.hbm %s0, %s192
          %s194 = sshll.u32 %s187, 4
          %s195 = int_to_ptr.vmem [resolvable:$true] %s194
          %200 = dma.hbm_to_vmem [thread:$0]  %s193, 4096, %s195, %s184, 128, 128, 8
        $region32: #{tpu_custom_call.1} parent=27 // pred_fallthru
          _
      $region28: #{tpu_custom_call.1} parent=5 // pred_fallthru
        _
      %p201 = scmp.le.s32.totalorder 1, %s17
      %p202 = scmp.lt.s32.totalorder %s17, 3
      %p203 = pnand %p201, %p202
      %p204 = pneg %p203
      // Predicated region
      $region33: #{tpu_custom_call.1} parent=5 // pred_check
        _
      $region34: #{tpu_custom_call.1} parent=5 // pred_check_branch
        %206 = sbr.rel (%p203) target = $region36
      $region35: #{tpu_custom_call.1} parent=5 // pred_region
        %s207 = ssub.s32 %s17, 1
        %s208 = sand.u32 %s30, 1
        %s209 = scalar_lea.sflag [#allocation4], %s208
        %s210 = sand.u32 %s30, 1
        %s211 = smul.addr %s210, 256
        %s212 = scalar_lea.vmem [#allocation3], %s211
        // Predicated region
        $region37: #{tpu_custom_call.1} parent=35 // pred_check
          %p213 = pneg %p43
        $region38: #{tpu_custom_call.1} parent=35 // pred_check_branch
          %215 = sbr.rel (%p213) target = $region40
        $region39: #{tpu_custom_call.1} parent=35 // pred_region
          %216 = dma.done %s209, 4096
        $region40: #{tpu_custom_call.1} parent=35 // pred_fallthru
          _
        // Predicated region
        $region41: #{tpu_custom_call.1} parent=35 // pred_check
          %p217 = pneg %p64
        $region42: #{tpu_custom_call.1} parent=35 // pred_check_branch
          %219 = sbr.rel (%p217) target = $region44
        $region43: #{tpu_custom_call.1} parent=35 // pred_region
          %220 = dma.done [#allocation7], 6144
        $region44: #{tpu_custom_call.1} parent=35 // pred_fallthru
          _
        // Predicated region
        $region45: #{tpu_custom_call.1} parent=35 // pred_check
          %p221 = pneg %p85
        $region46: #{tpu_custom_call.1} parent=35 // pred_check_branch
          %223 = sbr.rel (%p221) target = $region48
        $region47: #{tpu_custom_call.1} parent=35 // pred_region
          %224 = dma.done [#allocation7], 6144
        $region48: #{tpu_custom_call.1} parent=35 // pred_fallthru
          _
        %s225 = sand.u32 %s30, 1
        %s226 = scalar_lea.sflag [#allocation4], %s225
        %s227 = sand.u32 %s30, 1
        %s228 = smul.addr %s227, 256
        %s229 = scalar_lea.vmem [#allocation3], %s228
        %p230 = pneg %p43
        %p231 = pneg %p40
        %p232 = pneg %p64
        %p233 = pneg %p61
        %p234 = pneg %p85
        %p235 = pneg %p82
        %p236 = pneg %p106
        %p237 = pneg %p103
        %p238 = pneg %p132
        %p239 = pneg %p129
        %s240 = sand.u32 %s119, 1
        %s241 = scalar_lea.sflag [#allocation5], %s240
        %s242 = sand.u32 %s119, 1
        %s243 = smul.addr %s242, 256
        %s244 = scalar_lea.vmem [#allocation9], %s243
        %s245 = smul.u32 32, %s22
        %s246 = smul.u32 32, %s22
        %247 = vst [vmem:[#allocation2] sm:$0x1] 0.0
        %248 = vst [vmem:[#allocation2 + $0x18] sm:$0x1] 0.0
        %249 = vst [vmem:[#allocation2 + $0x30] sm:$0x1] 0.0
        %250 = vst [vmem:[#allocation2 + $0x48] sm:$0x1] 0.0
        %251 = vst [vmem:[#allocation2 + $0x60] sm:$0x1] 0.0
        %252 = vst [vmem:[#allocation2 + $0x78] sm:$0x1] 0.0
        %253 = vst [vmem:[#allocation2 + $0x90] sm:$0x1] 0.0
        %254 = vst [vmem:[#allocation2 + $0xa8] sm:$0x1] 0.0
        %255 = vst [vmem:[#allocation2 + $0xc0] sm:$0x1] 0.0
        %256 = vst [vmem:[#allocation2 + $0xd8] sm:$0x1] 0.0
        %257 = vst [vmem:[#allocation2 + $0xf0] sm:$0x1] 0.0
        %258 = vst [vmem:[#allocation2 + $0x108] sm:$0x1] 0.0
        %259 = vst [vmem:[#allocation2 + $0x120] sm:$0x1] 0.0
        %260 = vst [vmem:[#allocation2 + $0x138] sm:$0x1] 0.0
        %261 = vst [vmem:[#allocation2 + $0x150] sm:$0x1] 0.0
        %262 = vst [vmem:[#allocation2 + $0x168] sm:$0x1] 0.0
        %263 = vst [vmem:[#allocation2 + $0x11] sm:$0x1] 0.0
        %264 = vst [vmem:[#allocation2 + $0x29] sm:$0x1] 0.0
        %265 = vst [vmem:[#allocation2 + $0x41] sm:$0x1] 0.0
        %266 = vst [vmem:[#allocation2 + $0x59] sm:$0x1] 0.0
        %267 = vst [vmem:[#allocation2 + $0x71] sm:$0x1] 0.0
        %268 = vst [vmem:[#allocation2 + $0x89] sm:$0x1] 0.0
        %269 = vst [vmem:[#allocation2 + $0xa1] sm:$0x1] 0.0
        %270 = vst [vmem:[#allocation2 + $0xb9] sm:$0x1] 0.0
        %271 = vst [vmem:[#allocation2 + $0xd1] sm:$0x1] 0.0
        %272 = vst [vmem:[#allocation2 + $0xe9] sm:$0x1] 0.0
        %273 = vst [vmem:[#allocation2 + $0x101] sm:$0x1] 0.0
        %274 = vst [vmem:[#allocation2 + $0x119] sm:$0x1] 0.0
        %275 = vst [vmem:[#allocation2 + $0x131] sm:$0x1] 0.0
        %276 = vst [vmem:[#allocation2 + $0x149] sm:$0x1] 0.0
        %277 = vst [vmem:[#allocation2 + $0x161] sm:$0x1] 0.0
        %278 = vst [vmem:[#allocation2 + $0x179] sm:$0x1] 0.0
        %v279 = vld [vmem:[%s212] sm:$0xff]
        %v280 = vld [vmem:[%s212 + $0x8] sm:$0xff]
        %v281 = vld [vmem:[%s212 + $0x10] sm:$0xff]
        %v282 = vld [vmem:[%s212 + $0x18] sm:$0xff]
        %v283 = vld [vmem:[%s212 + $0x20] sm:$0xff]
        %v284 = vld [vmem:[%s212 + $0x28] sm:$0xff]
        %v285 = vld [vmem:[%s212 + $0x30] sm:$0xff]
        %v286 = vld [vmem:[%s212 + $0x38] sm:$0xff]
        %v287 = vld [vmem:[%s212 + $0x40] sm:$0xff]
        %v288 = vld [vmem:[%s212 + $0x48] sm:$0xff]
        %v289 = vld [vmem:[%s212 + $0x50] sm:$0xff]
        %v290 = vld [vmem:[%s212 + $0x58] sm:$0xff]
        %v291 = vld [vmem:[%s212 + $0x60] sm:$0xff]
        %v292 = vld [vmem:[%s212 + $0x68] sm:$0xff]
        %v293 = vld [vmem:[%s212 + $0x70] sm:$0xff]
        %v294 = vld [vmem:[%s212 + $0x78] sm:$0xff]
        %v295 = vld [vmem:[%s212 + $0x80] sm:$0xff]
        %v296 = vld [vmem:[%s212 + $0x88] sm:$0xff]
        %v297 = vld [vmem:[%s212 + $0x90] sm:$0xff]
        %v298 = vld [vmem:[%s212 + $0x98] sm:$0xff]
        %v299 = vld [vmem:[%s212 + $0xa0] sm:$0xff]
        %v300 = vld [vmem:[%s212 + $0xa8] sm:$0xff]
        %v301 = vld [vmem:[%s212 + $0xb0] sm:$0xff]
        %v302 = vld [vmem:[%s212 + $0xb8] sm:$0xff]
        %v303 = vld [vmem:[%s212 + $0xc0] sm:$0xff]
        %v304 = vld [vmem:[%s212 + $0xc8] sm:$0xff]
        %v305 = vld [vmem:[%s212 + $0xd0] sm:$0xff]
        %v306 = vld [vmem:[%s212 + $0xd8] sm:$0xff]
        %v307 = vld [vmem:[%s212 + $0xe0] sm:$0xff]
        %v308 = vld [vmem:[%s212 + $0xe8] sm:$0xff]
        %v309 = vld [vmem:[%s212 + $0xf0] sm:$0xff]
        %v310 = vld [vmem:[%s212 + $0xf8] sm:$0xff]
        %311 = vst [vmem:[#allocation2 + $0x1] sm:$0xff] %v279
        %312 = vst [vmem:[#allocation2 + $0x9] sm:$0xff] %v280
        %313 = vst [vmem:[#allocation2 + $0x19] sm:$0xff] %v281
        %314 = vst [vmem:[#allocation2 + $0x21] sm:$0xff] %v282
        %315 = vst [vmem:[#allocation2 + $0x31] sm:$0xff] %v283
        %316 = vst [vmem:[#allocation2 + $0x39] sm:$0xff] %v284
        %317 = vst [vmem:[#allocation2 + $0x49] sm:$0xff] %v285
        %318 = vst [vmem:[#allocation2 + $0x51] sm:$0xff] %v286
        %319 = vst [vmem:[#allocation2 + $0x61] sm:$0xff] %v287
        %320 = vst [vmem:[#allocation2 + $0x69] sm:$0xff] %v288
        %321 = vst [vmem:[#allocation2 + $0x79] sm:$0xff] %v289
        %322 = vst [vmem:[#allocation2 + $0x81] sm:$0xff] %v290
        %323 = vst [vmem:[#allocation2 + $0x91] sm:$0xff] %v291
        %324 = vst [vmem:[#allocation2 + $0x99] sm:$0xff] %v292
        %325 = vst [vmem:[#allocation2 + $0xa9] sm:$0xff] %v293
        %326 = vst [vmem:[#allocation2 + $0xb1] sm:$0xff] %v294
        %327 = vst [vmem:[#allocation2 + $0xc1] sm:$0xff] %v295
        %328 = vst [vmem:[#allocation2 + $0xc9] sm:$0xff] %v296
        %329 = vst [vmem:[#allocation2 + $0xd9] sm:$0xff] %v297
        %330 = vst [vmem:[#allocation2 + $0xe1] sm:$0xff] %v298
        %331 = vst [vmem:[#allocation2 + $0xf1] sm:$0xff] %v299
        %332 = vst [vmem:[#allocation2 + $0xf9] sm:$0xff] %v300
        %333 = vst [vmem:[#allocation2 + $0x109] sm:$0xff] %v301
        %334 = vst [vmem:[#allocation2 + $0x111] sm:$0xff] %v302
        %335 = vst [vmem:[#allocation2 + $0x121] sm:$0xff] %v303
        %336 = vst [vmem:[#allocation2 + $0x129] sm:$0xff] %v304
        %337 = vst [vmem:[#allocation2 + $0x139] sm:$0xff] %v305
        %338 = vst [vmem:[#allocation2 + $0x141] sm:$0xff] %v306
        %339 = vst [vmem:[#allocation2 + $0x151] sm:$0xff] %v307
        %340 = vst [vmem:[#allocation2 + $0x159] sm:$0xff] %v308
        %341 = vst [vmem:[#allocation2 + $0x169] sm:$0xff] %v309
        %342 = vst [vmem:[#allocation2 + $0x171] sm:$0xff] %v310
        %v343 = vld [vmem:[#allocation2] sm:$0xff]
        %v344 = vld [vmem:[#allocation2 + $0x8] sm:$0xff]
        %v345 = vld [vmem:[#allocation2 + $0x18] sm:$0xff]
        %v346 = vld [vmem:[#allocation2 + $0x20] sm:$0xff]
        %v347 = vld [vmem:[#allocation2 + $0x30] sm:$0xff]
        %v348 = vld [vmem:[#allocation2 + $0x38] sm:$0xff]
        %v349 = vld [vmem:[#allocation2 + $0x48] sm:$0xff]
        %v350 = vld [vmem:[#allocation2 + $0x50] sm:$0xff]
        %v351 = vld [vmem:[#allocation2 + $0x60] sm:$0xff]
        %v352 = vld [vmem:[#allocation2 + $0x68] sm:$0xff]
        %v353 = vld [vmem:[#allocation2 + $0x78] sm:$0xff]
        %v354 = vld [vmem:[#allocation2 + $0x80] sm:$0xff]
        %v355 = vld [vmem:[#allocation2 + $0x90] sm:$0xff]
        %v356 = vld [vmem:[#allocation2 + $0x98] sm:$0xff]
        %v357 = vld [vmem:[#allocation2 + $0xa8] sm:$0xff]
        %v358 = vld [vmem:[#allocation2 + $0xb0] sm:$0xff]
        %v359 = vld [vmem:[#allocation2 + $0xc0] sm:$0xff]
        %v360 = vld [vmem:[#allocation2 + $0xc8] sm:$0xff]
        %v361 = vld [vmem:[#allocation2 + $0xd8] sm:$0xff]
        %v362 = vld [vmem:[#allocation2 + $0xe0] sm:$0xff]
        %v363 = vld [vmem:[#allocation2 + $0xf0] sm:$0xff]
        %v364 = vld [vmem:[#allocation2 + $0xf8] sm:$0xff]
        %v365 = vld [vmem:[#allocation2 + $0x108] sm:$0xff]
        %v366 = vld [vmem:[#allocation2 + $0x110] sm:$0xff]
        %v367 = vld [vmem:[#allocation2 + $0x120] sm:$0xff]
        %v368 = vld [vmem:[#allocation2 + $0x128] sm:$0xff]
        %v369 = vld [vmem:[#allocation2 + $0x138] sm:$0xff]
        %v370 = vld [vmem:[#allocation2 + $0x140] sm:$0xff]
        %v371 = vld [vmem:[#allocation2 + $0x150] sm:$0xff]
        %v372 = vld [vmem:[#allocation2 + $0x158] sm:$0xff]
        %v373 = vld [vmem:[#allocation2 + $0x168] sm:$0xff]
        %v374 = vld [vmem:[#allocation2 + $0x170] sm:$0xff]
        %v375 = vld [vmem:[#allocation6] sm:$0xff]
        %v376 = vld [vmem:[#allocation6 + $0x8] sm:$0xff]
        %v377 = vld [vmem:[#allocation6 + $0x10] sm:$0xff]
        %v378 = vld [vmem:[#allocation6 + $0x18] sm:$0xff]
        %v379 = vld [vmem:[#allocation6 + $0x20] sm:$0xff]
        %v380 = vld [vmem:[#allocation6 + $0x28] sm:$0xff]
        %v381 = vld [vmem:[#allocation6 + $0x30] sm:$0xff]
        %v382 = vld [vmem:[#allocation6 + $0x38] sm:$0xff]
        %v383 = vld [vmem:[#allocation6 + $0x40] sm:$0xff]
        %v384 = vld [vmem:[#allocation6 + $0x48] sm:$0xff]
        %v385 = vld [vmem:[#allocation6 + $0x50] sm:$0xff]
        %v386 = vld [vmem:[#allocation6 + $0x58] sm:$0xff]
        %v387 = vld [vmem:[#allocation6 + $0x60] sm:$0xff]
        %v388 = vld [vmem:[#allocation6 + $0x68] sm:$0xff]
        %v389 = vld [vmem:[#allocation6 + $0x70] sm:$0xff]
        %v390 = vld [vmem:[#allocation6 + $0x78] sm:$0xff]
        %v391 = vld [vmem:[#allocation2 + $0x1] sm:$0xff]
        %v392 = vld [vmem:[#allocation2 + $0x9] sm:$0xff]
        %v393 = vld [vmem:[#allocation2 + $0x19] sm:$0xff]
        %v394 = vld [vmem:[#allocation2 + $0x21] sm:$0xff]
        %v395 = vld [vmem:[#allocation2 + $0x31] sm:$0xff]
        %v396 = vld [vmem:[#allocation2 + $0x39] sm:$0xff]
        %v397 = vld [vmem:[#allocation2 + $0x49] sm:$0xff]
        %v398 = vld [vmem:[#allocation2 + $0x51] sm:$0xff]
        %v399 = vld [vmem:[#allocation2 + $0x61] sm:$0xff]
        %v400 = vld [vmem:[#allocation2 + $0x69] sm:$0xff]
        %v401 = vld [vmem:[#allocation2 + $0x79] sm:$0xff]
        %v402 = vld [vmem:[#allocation2 + $0x81] sm:$0xff]
        %v403 = vld [vmem:[#allocation2 + $0x91] sm:$0xff]
        %v404 = vld [vmem:[#allocation2 + $0x99] sm:$0xff]
        %v405 = vld [vmem:[#allocation2 + $0xa9] sm:$0xff]
        %v406 = vld [vmem:[#allocation2 + $0xb1] sm:$0xff]
        %v407 = vld [vmem:[#allocation2 + $0xc1] sm:$0xff]
        %v408 = vld [vmem:[#allocation2 + $0xc9] sm:$0xff]
        %v409 = vld [vmem:[#allocation2 + $0xd9] sm:$0xff]
        %v410 = vld [vmem:[#allocation2 + $0xe1] sm:$0xff]
        %v411 = vld [vmem:[#allocation2 + $0xf1] sm:$0xff]
        %v412 = vld [vmem:[#allocation2 + $0xf9] sm:$0xff]
        %v413 = vld [vmem:[#allocation2 + $0x109] sm:$0xff]
        %v414 = vld [vmem:[#allocation2 + $0x111] sm:$0xff]
        %v415 = vld [vmem:[#allocation2 + $0x121] sm:$0xff]
        %v416 = vld [vmem:[#allocation2 + $0x129] sm:$0xff]
        %v417 = vld [vmem:[#allocation2 + $0x139] sm:$0xff]
        %v418 = vld [vmem:[#allocation2 + $0x141] sm:$0xff]
        %v419 = vld [vmem:[#allocation2 + $0x151] sm:$0xff]
        %v420 = vld [vmem:[#allocation2 + $0x159] sm:$0xff]
        %v421 = vld [vmem:[#allocation2 + $0x169] sm:$0xff]
        %v422 = vld [vmem:[#allocation2 + $0x171] sm:$0xff]
        %s423 = scalar_lea.vmem [#allocation6], 128
        %v424 = vld [vmem:[%s423] sm:$0xff]
        %v425 = vld [vmem:[%s423 + $0x8] sm:$0xff]
        %v426 = vld [vmem:[%s423 + $0x10] sm:$0xff]
        %v427 = vld [vmem:[%s423 + $0x18] sm:$0xff]
        %v428 = vld [vmem:[%s423 + $0x20] sm:$0xff]
        %v429 = vld [vmem:[%s423 + $0x28] sm:$0xff]
        %v430 = vld [vmem:[%s423 + $0x30] sm:$0xff]
        %v431 = vld [vmem:[%s423 + $0x38] sm:$0xff]
        %v432 = vld [vmem:[%s423 + $0x40] sm:$0xff]
        %v433 = vld [vmem:[%s423 + $0x48] sm:$0xff]
        %v434 = vld [vmem:[%s423 + $0x50] sm:$0xff]
        %v435 = vld [vmem:[%s423 + $0x58] sm:$0xff]
        %v436 = vld [vmem:[%s423 + $0x60] sm:$0xff]
        %v437 = vld [vmem:[%s423 + $0x68] sm:$0xff]
        %v438 = vld [vmem:[%s423 + $0x70] sm:$0xff]
        %v439 = vld [vmem:[%s423 + $0x78] sm:$0xff]
        %440 = vmatprep.subr.mxu0 0.0
        %441 = vmatpush1.msra.mxu0 %v424
        %442 = vmatprep.subr.mxu0 0.0
        %443 = vmatpush1.msra.mxu0 %v425
        %444 = vmatprep.subr.mxu0 0.0
        %445 = vmatpush1.msra.mxu0 %v426
        %446 = vmatprep.subr.mxu0 0.0
        %447 = vmatpush1.msra.mxu0 %v427
        %448 = vmatprep.subr.mxu0 0.0
        %449 = vmatpush1.msra.mxu0 %v428
        %450 = vmatprep.subr.mxu0 0.0
        %451 = vmatpush1.msra.mxu0 %v429
        %452 = vmatprep.subr.mxu0 0.0
        %453 = vmatpush1.msra.mxu0 %v430
        %454 = vmatprep.subr.mxu0 0.0
        %455 = vmatpush1.msra.mxu0 %v431
        %456 = vmatprep.subr.mxu0 0.0
        %457 = vmatpush1.msra.mxu0 %v432
        %458 = vmatprep.subr.mxu0 0.0
        %459 = vmatpush1.msra.mxu0 %v433
        %460 = vmatprep.subr.mxu0 0.0
        %461 = vmatpush1.msra.mxu0 %v434
        %462 = vmatprep.subr.mxu0 0.0
        %463 = vmatpush1.msra.mxu0 %v435
        %464 = vmatprep.subr.mxu0 0.0
        %465 = vmatpush1.msra.mxu0 %v436
        %466 = vmatprep.subr.mxu0 0.0
        %467 = vmatpush1.msra.mxu0 %v437
        %468 = vmatprep.subr.mxu0 0.0
        %469 = vmatpush1.msra.mxu0 %v438
        %470 = vmatprep.subr.mxu0 0.0
        %471 = vmatpush1.msra.mxu0 %v439
        %472 = vmatprep.subr.mxu0 0.0
        %473 = vmatpush1.msra.mxu0 0.0
        %474 = vmatprep.subr.mxu0 0.0
        %475 = vmatpush1.msra.mxu0 0.0
        %476 = vmatprep.subr.mxu0 0.0
        %477 = vmatpush1.msra.mxu0 0.0
        %478 = vmatprep.subr.mxu0 0.0
        %479 = vmatpush1.msra.mxu0 0.0
        %480 = vmatprep.subr.mxu0 0.0
        %481 = vmatpush1.msra.mxu0 0.0
        %482 = vmatprep.subr.mxu0 0.0
        %483 = vmatpush1.msra.mxu0 0.0
        %484 = vmatprep.subr.mxu0 0.0
        %485 = vmatpush1.msra.mxu0 0.0
        %486 = vmatprep.subr.mxu0 0.0
        %487 = vmatpush1.msra.mxu0 0.0
        %488 = vmatprep.subr.mxu0 0.0
        %489 = vmatpush1.msra.mxu0 0.0
        %490 = vmatprep.subr.mxu0 0.0
        %491 = vmatpush1.msra.mxu0 0.0
        %492 = vmatprep.subr.mxu0 0.0
        %493 = vmatpush1.msra.mxu0 0.0
        %494 = vmatprep.subr.mxu0 0.0
        %495 = vmatpush1.msra.mxu0 0.0
        %496 = vmatprep.subr.mxu0 0.0
        %497 = vmatpush1.msra.mxu0 0.0
        %498 = vmatprep.subr.mxu0 0.0
        %499 = vmatpush1.msra.mxu0 0.0
        %500 = vmatprep.subr.mxu0 0.0
        %501 = vmatpush1.msra.mxu0 0.0
        %502 = vmatprep.subr.mxu0 0.0
        %503 = vmatpush1.msra.mxu0 0.0
        %504 = vmatprep.mubr.f32.mxu0 0.0
        %505 = vmatmul.mubr.f32.gmra.mrb[0].mxu0 %v391
        %v506 = vpop.f32.mrb[0].mxu0
        %v507 = vadd.f32 0.0, %v506
        %v508 = vpop.f32.mrb[0].mxu0
        %509 = vmatprep.mubr.f32.mxu0 0.0
        %510 = vmatmul.mubr.f32.gmra.mrb[0].mxu0 %v392
        %v511 = vpop.f32.mrb[0].mxu0
        %v512 = vadd.f32 0.0, %v511
        %v513 = vpop.f32.mrb[0].mxu0
        %514 = vmatprep.mubr.f32.mxu0 0.0
        %515 = vmatmul.mubr.f32.gmra.mrb[0].mxu0 %v393
        %v516 = vpop.f32.mrb[0].mxu0
        %v517 = vadd.f32 0.0, %v516
        %v518 = vpop.f32.mrb[0].mxu0
        %519 = vmatprep.mubr.f32.mxu0 0.0
        %520 = vmatmul.mubr.f32.gmra.mrb[0].mxu0 %v394
        %v521 = vpop.f32.mrb[0].mxu0
        %v522 = vadd.f32 0.0, %v521
        %v523 = vpop.f32.mrb[0].mxu0
        %524 = vmatprep.mubr.f32.mxu0 0.0
        %525 = vmatmul.mubr.f32.gmra.mrb[0].mxu0 %v395
        %v526 = vpop.f32.mrb[0].mxu0
        %v527 = vadd.f32 0.0, %v526
        %v528 = vpop.f32.mrb[0].mxu0
        %529 = vmatprep.mubr.f32.mxu0 0.0
        %530 = vmatmul.mubr.f32.gmra.mrb[0].mxu0 %v396
        %v531 = vpop.f32.mrb[0].mxu0
        %v532 = vadd.f32 0.0, %v531
        %v533 = vpop.f32.mrb[0].mxu0
        %534 = vmatprep.mubr.f32.mxu0 0.0
        %535 = vmatmul.mubr.f32.gmra.mrb[0].mxu0 %v397
        %v536 = vpop.f32.mrb[0].mxu0
        %v537 = vadd.f32 0.0, %v536
        %v538 = vpop.f32.mrb[0].mxu0
        %539 = vmatprep.mubr.f32.mxu0 0.0
        %540 = vmatmul.mubr.f32.gmra.mrb[0].mxu0 %v398
        %v541 = vpop.f32.mrb[0].mxu0
        %v542 = vadd.f32 0.0, %v541
        %v543 = vpop.f32.mrb[0].mxu0
        %544 = vmatprep.mubr.f32.mxu0 0.0
        %545 = vmatmul.mubr.f32.gmra.mrb[0].mxu0 %v399
        %v546 = vpop.f32.mrb[0].mxu0
        %v547 = vadd.f32 0.0, %v546
        %v548 = vpop.f32.mrb[0].mxu0
        %549 = vmatprep.mubr.f32.mxu0 0.0
        %550 = vmatmul.mubr.f32.gmra.mrb[0].mxu0 %v400
        %v551 = vpop.f32.mrb[0].mxu0
        %v552 = vadd.f32 0.0, %v551
        %v553 = vpop.f32.mrb[0].mxu0
        %554 = vmatprep.mubr.f32.mxu0 0.0
        %555 = vmatmul.mubr.f32.gmra.mrb[0].mxu0 %v401
        %v556 = vpop.f32.mrb[0].mxu0
        %v557 = vadd.f32 0.0, %v556
        %v558 = vpop.f32.mrb[0].mxu0
        %559 = vmatprep.mubr.f32.mxu0 0.0
        %560 = vmatmul.mubr.f32.gmra.mrb[0].mxu0 %v402
        %v561 = vpop.f32.mrb[0].mxu0
        %v562 = vadd.f32 0.0, %v561
        %v563 = vpop.f32.mrb[0].mxu0
        %564 = vmatprep.mubr.f32.mxu0 0.0
        %565 = vmatmul.mubr.f32.gmra.mrb[0].mxu0 %v403
        %v566 = vpop.f32.mrb[0].mxu0
        %v567 = vadd.f32 0.0, %v566
        %v568 = vpop.f32.mrb[0].mxu0
        %569 = vmatprep.mubr.f32.mxu0 0.0
        %570 = vmatmul.mubr.f32.gmra.mrb[0].mxu0 %v404
        %v571 = vpop.f32.mrb[0].mxu0
        %v572 = vadd.f32 0.0, %v571
        %v573 = vpop.f32.mrb[0].mxu0
        %574 = vmatprep.mubr.f32.mxu0 0.0
        %575 = vmatmul.mubr.f32.gmra.mrb[0].mxu0 %v405
        %v576 = vpop.f32.mrb[0].mxu0
        %v577 = vadd.f32 0.0, %v576
        %v578 = vpop.f32.mrb[0].mxu0
        %579 = vmatprep.mubr.f32.mxu0 0.0
        %580 = vmatmul.mubr.f32.gmra.mrb[0].mxu0 %v406
        %v581 = vpop.f32.mrb[0].mxu0
        %v582 = vadd.f32 0.0, %v581
        %v583 = vpop.f32.mrb[0].mxu0
        %584 = vmatprep.mubr.f32.mxu0 0.0
        %585 = vmatmul.mubr.f32.gmra.mrb[0].mxu0 %v407
        %v586 = vpop.f32.mrb[0].mxu0
        %v587 = vadd.f32 0.0, %v586
        %v588 = vpop.f32.mrb[0].mxu0
        %589 = vmatprep.mubr.f32.mxu0 0.0
        %590 = vmatmul.mubr.f32.gmra.mrb[0].mxu0 %v408
        %v591 = vpop.f32.mrb[0].mxu0
        %v592 = vadd.f32 0.0, %v591
        %v593 = vpop.f32.mrb[0].mxu0
        %594 = vmatprep.mubr.f32.mxu0 0.0
        %595 = vmatmul.mubr.f32.gmra.mrb[0].mxu0 %v409
        %v596 = vpop.f32.mrb[0].mxu0
        %v597 = vadd.f32 0.0, %v596
        %v598 = vpop.f32.mrb[0].mxu0
        %599 = vmatprep.mubr.f32.mxu0 0.0
        %600 = vmatmul.mubr.f32.gmra.mrb[0].mxu0 %v410
        %v601 = vpop.f32.mrb[0].mxu0
        %v602 = vadd.f32 0.0, %v601
        %v603 = vpop.f32.mrb[0].mxu0
        %604 = vmatprep.mubr.f32.mxu0 0.0
        %605 = vmatmul.mubr.f32.gmra.mrb[0].mxu0 %v411
        %v606 = vpop.f32.mrb[0].mxu0
        %v607 = vadd.f32 0.0, %v606
        %v608 = vpop.f32.mrb[0].mxu0
        %609 = vmatprep.mubr.f32.mxu0 0.0
        %610 = vmatmul.mubr.f32.gmra.mrb[0].mxu0 %v412
        %v611 = vpop.f32.mrb[0].mxu0
        %v612 = vadd.f32 0.0, %v611
        %v613 = vpop.f32.mrb[0].mxu0
        %614 = vmatprep.mubr.f32.mxu0 0.0
        %615 = vmatmul.mubr.f32.gmra.mrb[0].mxu0 %v413
        %v616 = vpop.f32.mrb[0].mxu0
        %v617 = vadd.f32 0.0, %v616
        %v618 = vpop.f32.mrb[0].mxu0
        %619 = vmatprep.mubr.f32.mxu0 0.0
        %620 = vmatmul.mubr.f32.gmra.mrb[0].mxu0 %v414
        %v621 = vpop.f32.mrb[0].mxu0
        %v622 = vadd.f32 0.0, %v621
        %v623 = vpop.f32.mrb[0].mxu0
        %624 = vmatprep.mubr.f32.mxu0 0.0
        %625 = vmatmul.mubr.f32.gmra.mrb[0].mxu0 %v415
        %v626 = vpop.f32.mrb[0].mxu0
        %v627 = vadd.f32 0.0, %v626
        %v628 = vpop.f32.mrb[0].mxu0
        %629 = vmatprep.mubr.f32.mxu0 0.0
        %630 = vmatmul.mubr.f32.gmra.mrb[0].mxu0 %v416
        %v631 = vpop.f32.mrb[0].mxu0
        %v632 = vadd.f32 0.0, %v631
        %v633 = vpop.f32.mrb[0].mxu0
        %634 = vmatprep.mubr.f32.mxu0 0.0
        %635 = vmatmul.mubr.f32.gmra.mrb[0].mxu0 %v417
        %v636 = vpop.f32.mrb[0].mxu0
        %v637 = vadd.f32 0.0, %v636
        %v638 = vpop.f32.mrb[0].mxu0
        %639 = vmatprep.mubr.f32.mxu0 0.0
        %640 = vmatmul.mubr.f32.gmra.mrb[0].mxu0 %v418
        %v641 = vpop.f32.mrb[0].mxu0
        %v642 = vadd.f32 0.0, %v641
        %v643 = vpop.f32.mrb[0].mxu0
        %644 = vmatprep.mubr.f32.mxu0 0.0
        %645 = vmatmul.mubr.f32.gmra.mrb[0].mxu0 %v419
        %v646 = vpop.f32.mrb[0].mxu0
        %v647 = vadd.f32 0.0, %v646
        %v648 = vpop.f32.mrb[0].mxu0
        %649 = vmatprep.mubr.f32.mxu0 0.0
        %650 = vmatmul.mubr.f32.gmra.mrb[0].mxu0 %v420
        %v651 = vpop.f32.mrb[0].mxu0
        %v652 = vadd.f32 0.0, %v651
        %v653 = vpop.f32.mrb[0].mxu0
        %654 = vmatprep.mubr.f32.mxu0 0.0
        %655 = vmatmul.mubr.f32.gmra.mrb[0].mxu0 %v421
        %v656 = vpop.f32.mrb[0].mxu0
        %v657 = vadd.f32 0.0, %v656
        %v658 = vpop.f32.mrb[0].mxu0
        %659 = vmatprep.mubr.f32.mxu0 0.0
        %660 = vmatmul.mubr.f32.gmra.mrb[0].mxu0 %v422
        %v661 = vpop.f32.mrb[0].mxu0
        %v662 = vadd.f32 0.0, %v661
        %v663 = vpop.f32.mrb[0].mxu0
        %664 = vdwg.mxu0
        %665 = vmatprep.subr.mxu0 0.0
        %666 = vmatpush1.msra.mxu0 %v375
        %667 = vmatprep.subr.mxu0 0.0
        %668 = vmatpush1.msra.mxu0 %v376
        %669 = vmatprep.subr.mxu0 0.0
        %670 = vmatpush1.msra.mxu0 %v377
        %671 = vmatprep.subr.mxu0 0.0
        %672 = vmatpush1.msra.mxu0 %v378
        %673 = vmatprep.subr.mxu0 0.0
        %674 = vmatpush1.msra.mxu0 %v379
        %675 = vmatprep.subr.mxu0 0.0
        %676 = vmatpush1.msra.mxu0 %v380
        %677 = vmatprep.subr.mxu0 0.0
        %678 = vmatpush1.msra.mxu0 %v381
        %679 = vmatprep.subr.mxu0 0.0
        %680 = vmatpush1.msra.mxu0 %v382
        %681 = vmatprep.subr.mxu0 0.0
        %682 = vmatpush1.msra.mxu0 %v383
        %683 = vmatprep.subr.mxu0 0.0
        %684 = vmatpush1.msra.mxu0 %v384
        %685 = vmatprep.subr.mxu0 0.0
        %686 = vmatpush1.msra.mxu0 %v385
        %687 = vmatprep.subr.mxu0 0.0
        %688 = vmatpush1.msra.mxu0 %v386
        %689 = vmatprep.subr.mxu0 0.0
        %690 = vmatpush1.msra.mxu0 %v387
        %691 = vmatprep.subr.mxu0 0.0
        %692 = vmatpush1.msra.mxu0 %v388
        %693 = vmatprep.subr.mxu0 0.0
        %694 = vmatpush1.msra.mxu0 %v389
        %695 = vmatprep.subr.mxu0 0.0
        %696 = vmatpush1.msra.mxu0 %v390
        %697 = vmatprep.subr.mxu0 0.0
        %698 = vmatpush1.msra.mxu0 0.0
        %699 = vmatprep.subr.mxu0 0.0
        %700 = vmatpush1.msra.mxu0 0.0
        %701 = vmatprep.subr.mxu0 0.0
        %702 = vmatpush1.msra.mxu0 0.0
        %703 = vmatprep.subr.mxu0 0.0
        %704 = vmatpush1.msra.mxu0 0.0
        %705 = vmatprep.subr.mxu0 0.0
        %706 = vmatpush1.msra.mxu0 0.0
        %707 = vmatprep.subr.mxu0 0.0
        %708 = vmatpush1.msra.mxu0 0.0
        %709 = vmatprep.subr.mxu0 0.0
        %710 = vmatpush1.msra.mxu0 0.0
        %711 = vmatprep.subr.mxu0 0.0
        %712 = vmatpush1.msra.mxu0 0.0
        %713 = vmatprep.subr.mxu0 0.0
        %714 = vmatpush1.msra.mxu0 0.0
        %715 = vmatprep.subr.mxu0 0.0
        %716 = vmatpush1.msra.mxu0 0.0
        %717 = vmatprep.subr.mxu0 0.0
        %718 = vmatpush1.msra.mxu0 0.0
        %719 = vmatprep.subr.mxu0 0.0
        %720 = vmatpush1.msra.mxu0 0.0
        %721 = vmatprep.subr.mxu0 0.0
        %722 = vmatpush1.msra.mxu0 0.0
        %723 = vmatprep.subr.mxu0 0.0
        %724 = vmatpush1.msra.mxu0 0.0
        %725 = vmatprep.subr.mxu0 0.0
        %726 = vmatpush1.msra.mxu0 0.0
        %727 = vmatprep.subr.mxu0 0.0
        %728 = vmatpush1.msra.mxu0 0.0
        %729 = vmatprep.mubr.f32.mxu0 0.0
        %730 = vmatmul.mubr.f32.gmra.mrb[0].mxu0 %v343
        %v731 = vpop.f32.mrb[0].mxu0
        %v732 = vadd.f32 %v507, %v731
        %v733 = vpop.f32.mrb[0].mxu0
        %734 = vmatprep.mubr.f32.mxu0 0.0
        %735 = vmatmul.mubr.f32.gmra.mrb[0].mxu0 %v344
        %v736 = vpop.f32.mrb[0].mxu0
        %v737 = vadd.f32 %v512, %v736
        %v738 = vpop.f32.mrb[0].mxu0
        %739 = vmatprep.mubr.f32.mxu0 0.0
        %740 = vmatmul.mubr.f32.gmra.mrb[0].mxu0 %v345
        %v741 = vpop.f32.mrb[0].mxu0
        %v742 = vadd.f32 %v517, %v741
        %v743 = vpop.f32.mrb[0].mxu0
        %744 = vmatprep.mubr.f32.mxu0 0.0
        %745 = vmatmul.mubr.f32.gmra.mrb[0].mxu0 %v346
        %v746 = vpop.f32.mrb[0].mxu0
        %v747 = vadd.f32 %v522, %v746
        %v748 = vpop.f32.mrb[0].mxu0
        %749 = vmatprep.mubr.f32.mxu0 0.0
        %750 = vmatmul.mubr.f32.gmra.mrb[0].mxu0 %v347
        %v751 = vpop.f32.mrb[0].mxu0
        %v752 = vadd.f32 %v527, %v751
        %v753 = vpop.f32.mrb[0].mxu0
        %754 = vmatprep.mubr.f32.mxu0 0.0
        %755 = vmatmul.mubr.f32.gmra.mrb[0].mxu0 %v348
        %v756 = vpop.f32.mrb[0].mxu0
        %v757 = vadd.f32 %v532, %v756
        %v758 = vpop.f32.mrb[0].mxu0
        %759 = vmatprep.mubr.f32.mxu0 0.0
        %760 = vmatmul.mubr.f32.gmra.mrb[0].mxu0 %v349
        %v761 = vpop.f32.mrb[0].mxu0
        %v762 = vadd.f32 %v537, %v761
        %v763 = vpop.f32.mrb[0].mxu0
        %764 = vmatprep.mubr.f32.mxu0 0.0
        %765 = vmatmul.mubr.f32.gmra.mrb[0].mxu0 %v350
        %v766 = vpop.f32.mrb[0].mxu0
        %v767 = vadd.f32 %v542, %v766
        %v768 = vpop.f32.mrb[0].mxu0
        %769 = vmatprep.mubr.f32.mxu0 0.0
        %770 = vmatmul.mubr.f32.gmra.mrb[0].mxu0 %v351
        %v771 = vpop.f32.mrb[0].mxu0
        %v772 = vadd.f32 %v547, %v771
        %v773 = vpop.f32.mrb[0].mxu0
        %774 = vmatprep.mubr.f32.mxu0 0.0
        %775 = vmatmul.mubr.f32.gmra.mrb[0].mxu0 %v352
        %v776 = vpop.f32.mrb[0].mxu0
        %v777 = vadd.f32 %v552, %v776
        %v778 = vpop.f32.mrb[0].mxu0
        %779 = vmatprep.mubr.f32.mxu0 0.0
        %780 = vmatmul.mubr.f32.gmra.mrb[0].mxu0 %v353
        %v781 = vpop.f32.mrb[0].mxu0
        %v782 = vadd.f32 %v557, %v781
        %v783 = vpop.f32.mrb[0].mxu0
        %784 = vmatprep.mubr.f32.mxu0 0.0
        %785 = vmatmul.mubr.f32.gmra.mrb[0].mxu0 %v354
        %v786 = vpop.f32.mrb[0].mxu0
        %v787 = vadd.f32 %v562, %v786
        %v788 = vpop.f32.mrb[0].mxu0
        %789 = vmatprep.mubr.f32.mxu0 0.0
        %790 = vmatmul.mubr.f32.gmra.mrb[0].mxu0 %v355
        %v791 = vpop.f32.mrb[0].mxu0
        %v792 = vadd.f32 %v567, %v791
        %v793 = vpop.f32.mrb[0].mxu0
        %794 = vmatprep.mubr.f32.mxu0 0.0
        %795 = vmatmul.mubr.f32.gmra.mrb[0].mxu0 %v356
        %v796 = vpop.f32.mrb[0].mxu0
        %v797 = vadd.f32 %v572, %v796
        %v798 = vpop.f32.mrb[0].mxu0
        %799 = vmatprep.mubr.f32.mxu0 0.0
        %800 = vmatmul.mubr.f32.gmra.mrb[0].mxu0 %v357
        %v801 = vpop.f32.mrb[0].mxu0
        %v802 = vadd.f32 %v577, %v801
        %v803 = vpop.f32.mrb[0].mxu0
        %804 = vmatprep.mubr.f32.mxu0 0.0
        %805 = vmatmul.mubr.f32.gmra.mrb[0].mxu0 %v358
        %v806 = vpop.f32.mrb[0].mxu0
        %v807 = vadd.f32 %v582, %v806
        %v808 = vpop.f32.mrb[0].mxu0
        %809 = vmatprep.mubr.f32.mxu0 0.0
        %810 = vmatmul.mubr.f32.gmra.mrb[0].mxu0 %v359
        %v811 = vpop.f32.mrb[0].mxu0
        %v812 = vadd.f32 %v587, %v811
        %v813 = vpop.f32.mrb[0].mxu0
        %814 = vmatprep.mubr.f32.mxu0 0.0
        %815 = vmatmul.mubr.f32.gmra.mrb[0].mxu0 %v360
        %v816 = vpop.f32.mrb[0].mxu0
        %v817 = vadd.f32 %v592, %v816
        %v818 = vpop.f32.mrb[0].mxu0
        %819 = vmatprep.mubr.f32.mxu0 0.0
        %820 = vmatmul.mubr.f32.gmra.mrb[0].mxu0 %v361
        %v821 = vpop.f32.mrb[0].mxu0
        %v822 = vadd.f32 %v597, %v821
        %v823 = vpop.f32.mrb[0].mxu0
        %824 = vmatprep.mubr.f32.mxu0 0.0
        %825 = vmatmul.mubr.f32.gmra.mrb[0].mxu0 %v362
        %v826 = vpop.f32.mrb[0].mxu0
        %v827 = vadd.f32 %v602, %v826
        %v828 = vpop.f32.mrb[0].mxu0
        %829 = vmatprep.mubr.f32.mxu0 0.0
        %830 = vmatmul.mubr.f32.gmra.mrb[0].mxu0 %v363
        %v831 = vpop.f32.mrb[0].mxu0
        %v832 = vadd.f32 %v607, %v831
        %v833 = vpop.f32.mrb[0].mxu0
        %834 = vmatprep.mubr.f32.mxu0 0.0
        %835 = vmatmul.mubr.f32.gmra.mrb[0].mxu0 %v364
        %v836 = vpop.f32.mrb[0].mxu0
        %v837 = vadd.f32 %v612, %v836
        %v838 = vpop.f32.mrb[0].mxu0
        %839 = vmatprep.mubr.f32.mxu0 0.0
        %840 = vmatmul.mubr.f32.gmra.mrb[0].mxu0 %v365
        %v841 = vpop.f32.mrb[0].mxu0
        %v842 = vadd.f32 %v617, %v841
        %v843 = vpop.f32.mrb[0].mxu0
        %844 = vmatprep.mubr.f32.mxu0 0.0
        %845 = vmatmul.mubr.f32.gmra.mrb[0].mxu0 %v366
        %v846 = vpop.f32.mrb[0].mxu0
        %v847 = vadd.f32 %v622, %v846
        %v848 = vpop.f32.mrb[0].mxu0
        %849 = vmatprep.mubr.f32.mxu0 0.0
        %850 = vmatmul.mubr.f32.gmra.mrb[0].mxu0 %v367
        %v851 = vpop.f32.mrb[0].mxu0
        %v852 = vadd.f32 %v627, %v851
        %v853 = vpop.f32.mrb[0].mxu0
        %854 = vmatprep.mubr.f32.mxu0 0.0
        %855 = vmatmul.mubr.f32.gmra.mrb[0].mxu0 %v368
        %v856 = vpop.f32.mrb[0].mxu0
        %v857 = vadd.f32 %v632, %v856
        %v858 = vpop.f32.mrb[0].mxu0
        %859 = vmatprep.mubr.f32.mxu0 0.0
        %860 = vmatmul.mubr.f32.gmra.mrb[0].mxu0 %v369
        %v861 = vpop.f32.mrb[0].mxu0
        %v862 = vadd.f32 %v637, %v861
        %v863 = vpop.f32.mrb[0].mxu0
        %864 = vmatprep.mubr.f32.mxu0 0.0
        %865 = vmatmul.mubr.f32.gmra.mrb[0].mxu0 %v370
        %v866 = vpop.f32.mrb[0].mxu0
        %v867 = vadd.f32 %v642, %v866
        %v868 = vpop.f32.mrb[0].mxu0
        %869 = vmatprep.mubr.f32.mxu0 0.0
        %870 = vmatmul.mubr.f32.gmra.mrb[0].mxu0 %v371
        %v871 = vpop.f32.mrb[0].mxu0
        %v872 = vadd.f32 %v647, %v871
        %v873 = vpop.f32.mrb[0].mxu0
        %874 = vmatprep.mubr.f32.mxu0 0.0
        %875 = vmatmul.mubr.f32.gmra.mrb[0].mxu0 %v372
        %v876 = vpop.f32.mrb[0].mxu0
        %v877 = vadd.f32 %v652, %v876
        %v878 = vpop.f32.mrb[0].mxu0
        %879 = vmatprep.mubr.f32.mxu0 0.0
        %880 = vmatmul.mubr.f32.gmra.mrb[0].mxu0 %v373
        %v881 = vpop.f32.mrb[0].mxu0
        %v882 = vadd.f32 %v657, %v881
        %v883 = vpop.f32.mrb[0].mxu0
        %884 = vmatprep.mubr.f32.mxu0 0.0
        %885 = vmatmul.mubr.f32.gmra.mrb[0].mxu0 %v374
        %v886 = vpop.f32.mrb[0].mxu0
        %v887 = vadd.f32 %v662, %v886
        %v888 = vpop.f32.mrb[0].mxu0
        %889 = vdwg.mxu0
        %v890 = vld [vmem:[#allocation2 + $0x2] sm:$0xff]
        %v891 = vld [vmem:[#allocation2 + $0xa] sm:$0xff]
        %v892 = vld [vmem:[#allocation2 + $0x1a] sm:$0xff]
        %v893 = vld [vmem:[#allocation2 + $0x22] sm:$0xff]
        %v894 = vld [vmem:[#allocation2 + $0x32] sm:$0xff]
        %v895 = vld [vmem:[#allocation2 + $0x3a] sm:$0xff]
        %v896 = vld [vmem:[#allocation2 + $0x4a] sm:$0xff]
        %v897 = vld [vmem:[#allocation2 + $0x52] sm:$0xff]
        %v898 = vld [vmem:[#allocation2 + $0x62] sm:$0xff]
        %v899 = vld [vmem:[#allocation2 + $0x6a] sm:$0xff]
        %v900 = vld [vmem:[#allocation2 + $0x7a] sm:$0xff]
        %v901 = vld [vmem:[#allocation2 + $0x82] sm:$0xff]
        %v902 = vld [vmem:[#allocation2 + $0x92] sm:$0xff]
        %v903 = vld [vmem:[#allocation2 + $0x9a] sm:$0xff]
        %v904 = vld [vmem:[#allocation2 + $0xaa] sm:$0xff]
        %v905 = vld [vmem:[#allocation2 + $0xb2] sm:$0xff]
        %v906 = vld [vmem:[#allocation2 + $0xc2] sm:$0xff]
        %v907 = vld [vmem:[#allocation2 + $0xca] sm:$0xff]
        %v908 = vld [vmem:[#allocation2 + $0xda] sm:$0xff]
        %v909 = vld [vmem:[#allocation2 + $0xe2] sm:$0xff]
        %v910 = vld [vmem:[#allocation2 + $0xf2] sm:$0xff]
        %v911 = vld [vmem:[#allocation2 + $0xfa] sm:$0xff]
        %v912 = vld [vmem:[#allocation2 + $0x10a] sm:$0xff]
        %v913 = vld [vmem:[#allocation2 + $0x112] sm:$0xff]
        %v914 = vld [vmem:[#allocation2 + $0x122] sm:$0xff]
        %v915 = vld [vmem:[#allocation2 + $0x12a] sm:$0xff]
        %v916 = vld [vmem:[#allocation2 + $0x13a] sm:$0xff]
        %v917 = vld [vmem:[#allocation2 + $0x142] sm:$0xff]
        %v918 = vld [vmem:[#allocation2 + $0x152] sm:$0xff]
        %v919 = vld [vmem:[#allocation2 + $0x15a] sm:$0xff]
        %v920 = vld [vmem:[#allocation2 + $0x16a] sm:$0xff]
        %v921 = vld [vmem:[#allocation2 + $0x172] sm:$0xff]
        %s922 = scalar_lea.vmem [#allocation6], 256
        %v923 = vld [vmem:[%s922] sm:$0xff]
        %v924 = vld [vmem:[%s922 + $0x8] sm:$0xff]
        %v925 = vld [vmem:[%s922 + $0x10] sm:$0xff]
        %v926 = vld [vmem:[%s922 + $0x18] sm:$0xff]
        %v927 = vld [vmem:[%s922 + $0x20] sm:$0xff]
        %v928 = vld [vmem:[%s922 + $0x28] sm:$0xff]
        %v929 = vld [vmem:[%s922 + $0x30] sm:$0xff]
        %v930 = vld [vmem:[%s922 + $0x38] sm:$0xff]
        %v931 = vld [vmem:[%s922 + $0x40] sm:$0xff]
        %v932 = vld [vmem:[%s922 + $0x48] sm:$0xff]
        %v933 = vld [vmem:[%s922 + $0x50] sm:$0xff]
        %v934 = vld [vmem:[%s922 + $0x58] sm:$0xff]
        %v935 = vld [vmem:[%s922 + $0x60] sm:$0xff]
        %v936 = vld [vmem:[%s922 + $0x68] sm:$0xff]
        %v937 = vld [vmem:[%s922 + $0x70] sm:$0xff]
        %v938 = vld [vmem:[%s922 + $0x78] sm:$0xff]
        %939 = vmatprep.subr.mxu0 0.0
        %940 = vmatpush1.msra.mxu0 %v923
        %941 = vmatprep.subr.mxu0 0.0
        %942 = vmatpush1.msra.mxu0 %v924
        %943 = vmatprep.subr.mxu0 0.0
        %944 = vmatpush1.msra.mxu0 %v925
        %945 = vmatprep.subr.mxu0 0.0
        %946 = vmatpush1.msra.mxu0 %v926
        %947 = vmatprep.subr.mxu0 0.0
        %948 = vmatpush1.msra.mxu0 %v927
        %949 = vmatprep.subr.mxu0 0.0
        %950 = vmatpush1.msra.mxu0 %v928
        %951 = vmatprep.subr.mxu0 0.0
        %952 = vmatpush1.msra.mxu0 %v929
        %953 = vmatprep.subr.mxu0 0.0
        %954 = vmatpush1.msra.mxu0 %v930
        %955 = vmatprep.subr.mxu0 0.0
        %956 = vmatpush1.msra.mxu0 %v931
        %957 = vmatprep.subr.mxu0 0.0
        %958 = vmatpush1.msra.mxu0 %v932
        %959 = vmatprep.subr.mxu0 0.0
        %960 = vmatpush1.msra.mxu0 %v933
        %961 = vmatprep.subr.mxu0 0.0
        %962 = vmatpush1.msra.mxu0 %v934
        %963 = vmatprep.subr.mxu0 0.0
        %964 = vmatpush1.msra.mxu0 %v935
        %965 = vmatprep.subr.mxu0 0.0
        %966 = vmatpush1.msra.mxu0 %v936
        %967 = vmatprep.subr.mxu0 0.0
        %968 = vmatpush1.msra.mxu0 %v937
        %969 = vmatprep.subr.mxu0 0.0
        %970 = vmatpush1.msra.mxu0 %v938
        %971 = vmatprep.subr.mxu0 0.0
        %972 = vmatpush1.msra.mxu0 0.0
        %973 = vmatprep.subr.mxu0 0.0
        %974 = vmatpush1.msra.mxu0 0.0
        %975 = vmatprep.subr.mxu0 0.0
        %976 = vmatpush1.msra.mxu0 0.0
        %977 = vmatprep.subr.mxu0 0.0
        %978 = vmatpush1.msra.mxu0 0.0
        %979 = vmatprep.subr.mxu0 0.0
        %980 = vmatpush1.msra.mxu0 0.0
        %981 = vmatprep.subr.mxu0 0.0
        %982 = vmatpush1.msra.mxu0 0.0
        %983 = vmatprep.subr.mxu0 0.0
        %984 = vmatpush1.msra.mxu0 0.0
        %985 = vmatprep.subr.mxu0 0.0
        %986 = vmatpush1.msra.mxu0 0.0
        %987 = vmatprep.subr.mxu0 0.0
        %988 = vmatpush1.msra.mxu0 0.0
        %989 = vmatprep.subr.mxu0 0.0
        %990 = vmatpush1.msra.mxu0 0.0
        %991 = vmatprep.subr.mxu0 0.0
        %992 = vmatpush1.msra.mxu0 0.0
        %993 = vmatprep.subr.mxu0 0.0
        %994 = vmatpush1.msra.mxu0 0.0
        %995 = vmatprep.subr.mxu0 0.0
        %996 = vmatpush1.msra.mxu0 0.0
        %997 = vmatprep.subr.mxu0 0.0
        %998 = vmatpush1.msra.mxu0 0.0
        %999 = vmatprep.subr.mxu0 0.0
        %1000 = vmatpush1.msra.mxu0 0.0
        %1001 = vmatprep.subr.mxu0 0.0
        %1002 = vmatpush1.msra.mxu0 0.0
        %1003 = vmatprep.mubr.f32.mxu0 0.0
        %1004 = vmatmul.mubr.f32.gmra.mrb[0].mxu0 %v890
        %v1005 = vpop.f32.mrb[0].mxu0
        %v1006 = vadd.f32 0.0, %v1005
        %v1007 = vpop.f32.mrb[0].mxu0
        %1008 = vmatprep.mubr.f32.mxu0 0.0
        %1009 = vmatmul.mubr.f32.gmra.mrb[0].mxu0 %v891
        %v1010 = vpop.f32.mrb[0].mxu0
        %v1011 = vadd.f32 0.0, %v1010
        %v1012 = vpop.f32.mrb[0].mxu0
        %1013 = vmatprep.mubr.f32.mxu0 0.0
        %1014 = vmatmul.mubr.f32.gmra.mrb[0].mxu0 %v892
        %v1015 = vpop.f32.mrb[0].mxu0
        %v1016 = vadd.f32 0.0, %v1015
        %v1017 = vpop.f32.mrb[0].mxu0
        %1018 = vmatprep.mubr.f32.mxu0 0.0
        %1019 = vmatmul.mubr.f32.gmra.mrb[0].mxu0 %v893
        %v1020 = vpop.f32.mrb[0].mxu0
        %v1021 = vadd.f32 0.0, %v1020
        %v1022 = vpop.f32.mrb[0].mxu0
        %1023 = vmatprep.mubr.f32.mxu0 0.0
        %1024 = vmatmul.mubr.f32.gmra.mrb[0].mxu0 %v894
        %v1025 = vpop.f32.mrb[0].mxu0
        %v1026 = vadd.f32 0.0, %v1025
        %v1027 = vpop.f32.mrb[0].mxu0
        %1028 = vmatprep.mubr.f32.mxu0 0.0
        %1029 = vmatmul.mubr.f32.gmra.mrb[0].mxu0 %v895
        %v1030 = vpop.f32.mrb[0].mxu0
        %v1031 = vadd.f32 0.0, %v1030
        %v1032 = vpop.f32.mrb[0].mxu0
        %1033 = vmatprep.mubr.f32.mxu0 0.0
        %1034 = vmatmul.mubr.f32.gmra.mrb[0].mxu0 %v896
        %v1035 = vpop.f32.mrb[0].mxu0
        %v1036 = vadd.f32 0.0, %v1035
        %v1037 = vpop.f32.mrb[0].mxu0
        %1038 = vmatprep.mubr.f32.mxu0 0.0
        %1039 = vmatmul.mubr.f32.gmra.mrb[0].mxu0 %v897
        %v1040 = vpop.f32.mrb[0].mxu0
        %v1041 = vadd.f32 0.0, %v1040
        %v1042 = vpop.f32.mrb[0].mxu0
        %1043 = vmatprep.mubr.f32.mxu0 0.0
        %1044 = vmatmul.mubr.f32.gmra.mrb[0].mxu0 %v898
        %v1045 = vpop.f32.mrb[0].mxu0
        %v1046 = vadd.f32 0.0, %v1045
        %v1047 = vpop.f32.mrb[0].mxu0
        %1048 = vmatprep.mubr.f32.mxu0 0.0
        %1049 = vmatmul.mubr.f32.gmra.mrb[0].mxu0 %v899
        %v1050 = vpop.f32.mrb[0].mxu0
        %v1051 = vadd.f32 0.0, %v1050
        %v1052 = vpop.f32.mrb[0].mxu0
        %1053 = vmatprep.mubr.f32.mxu0 0.0
        %1054 = vmatmul.mubr.f32.gmra.mrb[0].mxu0 %v900
        %v1055 = vpop.f32.mrb[0].mxu0
        %v1056 = vadd.f32 0.0, %v1055
        %v1057 = vpop.f32.mrb[0].mxu0
        %1058 = vmatprep.mubr.f32.mxu0 0.0
        %1059 = vmatmul.mubr.f32.gmra.mrb[0].mxu0 %v901
        %v1060 = vpop.f32.mrb[0].mxu0
        %v1061 = vadd.f32 0.0, %v1060
        %v1062 = vpop.f32.mrb[0].mxu0
        %1063 = vmatprep.mubr.f32.mxu0 0.0
        %1064 = vmatmul.mubr.f32.gmra.mrb[0].mxu0 %v902
        %v1065 = vpop.f32.mrb[0].mxu0
        %v1066 = vadd.f32 0.0, %v1065
        %v1067 = vpop.f32.mrb[0].mxu0
        %1068 = vmatprep.mubr.f32.mxu0 0.0
        %1069 = vmatmul.mubr.f32.gmra.mrb[0].mxu0 %v903
        %v1070 = vpop.f32.mrb[0].mxu0
        %v1071 = vadd.f32 0.0, %v1070
        %v1072 = vpop.f32.mrb[0].mxu0
        %1073 = vmatprep.mubr.f32.mxu0 0.0
        %1074 = vmatmul.mubr.f32.gmra.mrb[0].mxu0 %v904
        %v1075 = vpop.f32.mrb[0].mxu0
        %v1076 = vadd.f32 0.0, %v1075
        %v1077 = vpop.f32.mrb[0].mxu0
        %1078 = vmatprep.mubr.f32.mxu0 0.0
        %1079 = vmatmul.mubr.f32.gmra.mrb[0].mxu0 %v905
        %v1080 = vpop.f32.mrb[0].mxu0
        %v1081 = vadd.f32 0.0, %v1080
        %v1082 = vpop.f32.mrb[0].mxu0
        %1083 = vmatprep.mubr.f32.mxu0 0.0
        %1084 = vmatmul.mubr.f32.gmra.mrb[0].mxu0 %v906
        %v1085 = vpop.f32.mrb[0].mxu0
        %v1086 = vadd.f32 0.0, %v1085
        %v1087 = vpop.f32.mrb[0].mxu0
        %1088 = vmatprep.mubr.f32.mxu0 0.0
        %1089 = vmatmul.mubr.f32.gmra.mrb[0].mxu0 %v907
        %v1090 = vpop.f32.mrb[0].mxu0
        %v1091 = vadd.f32 0.0, %v1090
        %v1092 = vpop.f32.mrb[0].mxu0
        %1093 = vmatprep.mubr.f32.mxu0 0.0
        %1094 = vmatmul.mubr.f32.gmra.mrb[0].mxu0 %v908
        %v1095 = vpop.f32.mrb[0].mxu0
        %v1096 = vadd.f32 0.0, %v1095
        %v1097 = vpop.f32.mrb[0].mxu0
        %1098 = vmatprep.mubr.f32.mxu0 0.0
        %1099 = vmatmul.mubr.f32.gmra.mrb[0].mxu0 %v909
        %v1100 = vpop.f32.mrb[0].mxu0
        %v1101 = vadd.f32 0.0, %v1100
        %v1102 = vpop.f32.mrb[0].mxu0
        %1103 = vmatprep.mubr.f32.mxu0 0.0
        %1104 = vmatmul.mubr.f32.gmra.mrb[0].mxu0 %v910
        %v1105 = vpop.f32.mrb[0].mxu0
        %v1106 = vadd.f32 0.0, %v1105
        %v1107 = vpop.f32.mrb[0].mxu0
        %1108 = vmatprep.mubr.f32.mxu0 0.0
        %1109 = vmatmul.mubr.f32.gmra.mrb[0].mxu0 %v911
        %v1110 = vpop.f32.mrb[0].mxu0
        %v1111 = vadd.f32 0.0, %v1110
        %v1112 = vpop.f32.mrb[0].mxu0
        %1113 = vmatprep.mubr.f32.mxu0 0.0
        %1114 = vmatmul.mubr.f32.gmra.mrb[0].mxu0 %v912
        %v1115 = vpop.f32.mrb[0].mxu0
        %v1116 = vadd.f32 0.0, %v1115
        %v1117 = vpop.f32.mrb[0].mxu0
        %1118 = vmatprep.mubr.f32.mxu0 0.0
        %1119 = vmatmul.mubr.f32.gmra.mrb[0].mxu0 %v913
        %v1120 = vpop.f32.mrb[0].mxu0
        %v1121 = vadd.f32 0.0, %v1120
        %v1122 = vpop.f32.mrb[0].mxu0
        %1123 = vmatprep.mubr.f32.mxu0 0.0
        %1124 = vmatmul.mubr.f32.gmra.mrb[0].mxu0 %v914
        %v1125 = vpop.f32.mrb[0].mxu0
        %v1126 = vadd.f32 0.0, %v1125
        %v1127 = vpop.f32.mrb[0].mxu0
        %1128 = vmatprep.mubr.f32.mxu0 0.0
        %1129 = vmatmul.mubr.f32.gmra.mrb[0].mxu0 %v915
        %v1130 = vpop.f32.mrb[0].mxu0
        %v1131 = vadd.f32 0.0, %v1130
        %v1132 = vpop.f32.mrb[0].mxu0
        %1133 = vmatprep.mubr.f32.mxu0 0.0
        %1134 = vmatmul.mubr.f32.gmra.mrb[0].mxu0 %v916
        %v1135 = vpop.f32.mrb[0].mxu0
        %v1136 = vadd.f32 0.0, %v1135
        %v1137 = vpop.f32.mrb[0].mxu0
        %1138 = vmatprep.mubr.f32.mxu0 0.0
        %1139 = vmatmul.mubr.f32.gmra.mrb[0].mxu0 %v917
        %v1140 = vpop.f32.mrb[0].mxu0
        %v1141 = vadd.f32 0.0, %v1140
        %v1142 = vpop.f32.mrb[0].mxu0
        %1143 = vmatprep.mubr.f32.mxu0 0.0
        %1144 = vmatmul.mubr.f32.gmra.mrb[0].mxu0 %v918
        %v1145 = vpop.f32.mrb[0].mxu0
        %v1146 = vadd.f32 0.0, %v1145
        %v1147 = vpop.f32.mrb[0].mxu0
        %1148 = vmatprep.mubr.f32.mxu0 0.0
        %1149 = vmatmul.mubr.f32.gmra.mrb[0].mxu0 %v919
        %v1150 = vpop.f32.mrb[0].mxu0
        %v1151 = vadd.f32 0.0, %v1150
        %v1152 = vpop.f32.mrb[0].mxu0
        %1153 = vmatprep.mubr.f32.mxu0 0.0
        %1154 = vmatmul.mubr.f32.gmra.mrb[0].mxu0 %v920
        %v1155 = vpop.f32.mrb[0].mxu0
        %v1156 = vadd.f32 0.0, %v1155
        %v1157 = vpop.f32.mrb[0].mxu0
        %1158 = vmatprep.mubr.f32.mxu0 0.0
        %1159 = vmatmul.mubr.f32.gmra.mrb[0].mxu0 %v921
        %v1160 = vpop.f32.mrb[0].mxu0
        %v1161 = vadd.f32 0.0, %v1160
        %v1162 = vpop.f32.mrb[0].mxu0
        %1163 = vdwg.mxu0
        %v1164 = vadd.f32 %v732, %v1006
        %v1165 = vadd.f32 %v737, %v1011
        %v1166 = vadd.f32 %v742, %v1016
        %v1167 = vadd.f32 %v747, %v1021
        %v1168 = vadd.f32 %v752, %v1026
        %v1169 = vadd.f32 %v757, %v1031
        %v1170 = vadd.f32 %v762, %v1036
        %v1171 = vadd.f32 %v767, %v1041
        %v1172 = vadd.f32 %v772, %v1046
        %v1173 = vadd.f32 %v777, %v1051
        %v1174 = vadd.f32 %v782, %v1056
        %v1175 = vadd.f32 %v787, %v1061
        %v1176 = vadd.f32 %v792, %v1066
        %v1177 = vadd.f32 %v797, %v1071
        %v1178 = vadd.f32 %v802, %v1076
        %v1179 = vadd.f32 %v807, %v1081
        %v1180 = vadd.f32 %v812, %v1086
        %v1181 = vadd.f32 %v817, %v1091
        %v1182 = vadd.f32 %v822, %v1096
        %v1183 = vadd.f32 %v827, %v1101
        %v1184 = vadd.f32 %v832, %v1106
        %v1185 = vadd.f32 %v837, %v1111
        %v1186 = vadd.f32 %v842, %v1116
        %v1187 = vadd.f32 %v847, %v1121
        %v1188 = vadd.f32 %v852, %v1126
        %v1189 = vadd.f32 %v857, %v1131
        %v1190 = vadd.f32 %v862, %v1136
        %v1191 = vadd.f32 %v867, %v1141
        %v1192 = vadd.f32 %v872, %v1146
        %v1193 = vadd.f32 %v877, %v1151
        %v1194 = vadd.f32 %v882, %v1156
        %v1195 = vadd.f32 %v887, %v1161
        %v1196 = vld [vmem:[%s3] sm:$0x1]
        %v1197 = vlaneseq
        %v1198 = vshrl.u32 %v1197, 7
        %v1199 = vsub.s32 0, %v1198
        %v1200 = vrot.slane %v1196, %v1199
        %v1201 = vmul.f32 %v1164, %v1200
        %v1202 = vmul.f32 %v1165, %v1200
        %v1203 = vmul.f32 %v1166, %v1200
        %v1204 = vmul.f32 %v1167, %v1200
        %v1205 = vmul.f32 %v1168, %v1200
        %v1206 = vmul.f32 %v1169, %v1200
        %v1207 = vmul.f32 %v1170, %v1200
        %v1208 = vmul.f32 %v1171, %v1200
        %v1209 = vmul.f32 %v1172, %v1200
        %v1210 = vmul.f32 %v1173, %v1200
        %v1211 = vmul.f32 %v1174, %v1200
        %v1212 = vmul.f32 %v1175, %v1200
        %v1213 = vmul.f32 %v1176, %v1200
        %v1214 = vmul.f32 %v1177, %v1200
        %v1215 = vmul.f32 %v1178, %v1200
        %v1216 = vmul.f32 %v1179, %v1200
        %v1217 = vmul.f32 %v1180, %v1200
        %v1218 = vmul.f32 %v1181, %v1200
        %v1219 = vmul.f32 %v1182, %v1200
        %v1220 = vmul.f32 %v1183, %v1200
        %v1221 = vmul.f32 %v1184, %v1200
        %v1222 = vmul.f32 %v1185, %v1200
        %v1223 = vmul.f32 %v1186, %v1200
        %v1224 = vmul.f32 %v1187, %v1200
        %v1225 = vmul.f32 %v1188, %v1200
        %v1226 = vmul.f32 %v1189, %v1200
        %v1227 = vmul.f32 %v1190, %v1200
        %v1228 = vmul.f32 %v1191, %v1200
        %v1229 = vmul.f32 %v1192, %v1200
        %v1230 = vmul.f32 %v1193, %v1200
        %v1231 = vmul.f32 %v1194, %v1200
        %v1232 = vmul.f32 %v1195, %v1200
        %v1233 = vld [vmem:[%s3 + $0x1] sm:$0x1]
        %v1234 = vlaneseq
        %v1235 = vshrl.u32 %v1234, 7
        %v1236 = vsub.s32 0, %v1235
        %v1237 = vrot.slane %v1233, %v1236
        %v1238 = vadd.f32 %v1201, %v1237
        %v1239 = vadd.f32 %v1202, %v1237
        %v1240 = vadd.f32 %v1203, %v1237
        %v1241 = vadd.f32 %v1204, %v1237
        %v1242 = vadd.f32 %v1205, %v1237
        %v1243 = vadd.f32 %v1206, %v1237
        %v1244 = vadd.f32 %v1207, %v1237
        %v1245 = vadd.f32 %v1208, %v1237
        %v1246 = vadd.f32 %v1209, %v1237
        %v1247 = vadd.f32 %v1210, %v1237
        %v1248 = vadd.f32 %v1211, %v1237
        %v1249 = vadd.f32 %v1212, %v1237
        %v1250 = vadd.f32 %v1213, %v1237
        %v1251 = vadd.f32 %v1214, %v1237
        %v1252 = vadd.f32 %v1215, %v1237
        %v1253 = vadd.f32 %v1216, %v1237
        %v1254 = vadd.f32 %v1217, %v1237
        %v1255 = vadd.f32 %v1218, %v1237
        %v1256 = vadd.f32 %v1219, %v1237
        %v1257 = vadd.f32 %v1220, %v1237
        %v1258 = vadd.f32 %v1221, %v1237
        %v1259 = vadd.f32 %v1222, %v1237
        %v1260 = vadd.f32 %v1223, %v1237
        %v1261 = vadd.f32 %v1224, %v1237
        %v1262 = vadd.f32 %v1225, %v1237
        %v1263 = vadd.f32 %v1226, %v1237
        %v1264 = vadd.f32 %v1227, %v1237
        %v1265 = vadd.f32 %v1228, %v1237
        %v1266 = vadd.f32 %v1229, %v1237
        %v1267 = vadd.f32 %v1230, %v1237
        %v1268 = vadd.f32 %v1231, %v1237
        %v1269 = vadd.f32 %v1232, %v1237
        %v1270 = vmax.f32 %v1238, 0.0
        %v1271 = vmax.f32 %v1239, 0.0
        %v1272 = vmax.f32 %v1240, 0.0
        %v1273 = vmax.f32 %v1241, 0.0
        %v1274 = vmax.f32 %v1242, 0.0
        %v1275 = vmax.f32 %v1243, 0.0
        %v1276 = vmax.f32 %v1244, 0.0
        %v1277 = vmax.f32 %v1245, 0.0
        %v1278 = vmax.f32 %v1246, 0.0
        %v1279 = vmax.f32 %v1247, 0.0
        %v1280 = vmax.f32 %v1248, 0.0
        %v1281 = vmax.f32 %v1249, 0.0
        %v1282 = vmax.f32 %v1250, 0.0
        %v1283 = vmax.f32 %v1251, 0.0
        %v1284 = vmax.f32 %v1252, 0.0
        %v1285 = vmax.f32 %v1253, 0.0
        %v1286 = vmax.f32 %v1254, 0.0
        %v1287 = vmax.f32 %v1255, 0.0
        %v1288 = vmax.f32 %v1256, 0.0
        %v1289 = vmax.f32 %v1257, 0.0
        %v1290 = vmax.f32 %v1258, 0.0
        %v1291 = vmax.f32 %v1259, 0.0
        %v1292 = vmax.f32 %v1260, 0.0
        %v1293 = vmax.f32 %v1261, 0.0
        %v1294 = vmax.f32 %v1262, 0.0
        %v1295 = vmax.f32 %v1263, 0.0
        %v1296 = vmax.f32 %v1264, 0.0
        %v1297 = vmax.f32 %v1265, 0.0
        %v1298 = vmax.f32 %v1266, 0.0
        %v1299 = vmax.f32 %v1267, 0.0
        %v1300 = vmax.f32 %v1268, 0.0
        %v1301 = vmax.f32 %v1269, 0.0
        %1302 = vst [vmem:[#allocation2 + $0x1] sm:$0xff] %v1270
        %1303 = vst [vmem:[#allocation2 + $0x9] sm:$0xff] %v1271
        %1304 = vst [vmem:[#allocation2 + $0x19] sm:$0xff] %v1272
        %1305 = vst [vmem:[#allocation2 + $0x21] sm:$0xff] %v1273
        %1306 = vst [vmem:[#allocation2 + $0x31] sm:$0xff] %v1274
        %1307 = vst [vmem:[#allocation2 + $0x39] sm:$0xff] %v1275
        %1308 = vst [vmem:[#allocation2 + $0x49] sm:$0xff] %v1276
        %1309 = vst [vmem:[#allocation2 + $0x51] sm:$0xff] %v1277
        %1310 = vst [vmem:[#allocation2 + $0x61] sm:$0xff] %v1278
        %1311 = vst [vmem:[#allocation2 + $0x69] sm:$0xff] %v1279
        %1312 = vst [vmem:[#allocation2 + $0x79] sm:$0xff] %v1280
        %1313 = vst [vmem:[#allocation2 + $0x81] sm:$0xff] %v1281
        %1314 = vst [vmem:[#allocation2 + $0x91] sm:$0xff] %v1282
        %1315 = vst [vmem:[#allocation2 + $0x99] sm:$0xff] %v1283
        %1316 = vst [vmem:[#allocation2 + $0xa9] sm:$0xff] %v1284
        %1317 = vst [vmem:[#allocation2 + $0xb1] sm:$0xff] %v1285
        %1318 = vst [vmem:[#allocation2 + $0xc1] sm:$0xff] %v1286
        %1319 = vst [vmem:[#allocation2 + $0xc9] sm:$0xff] %v1287
        %1320 = vst [vmem:[#allocation2 + $0xd9] sm:$0xff] %v1288
        %1321 = vst [vmem:[#allocation2 + $0xe1] sm:$0xff] %v1289
        %1322 = vst [vmem:[#allocation2 + $0xf1] sm:$0xff] %v1290
        %1323 = vst [vmem:[#allocation2 + $0xf9] sm:$0xff] %v1291
        %1324 = vst [vmem:[#allocation2 + $0x109] sm:$0xff] %v1292
        %1325 = vst [vmem:[#allocation2 + $0x111] sm:$0xff] %v1293
        %1326 = vst [vmem:[#allocation2 + $0x121] sm:$0xff] %v1294
        %1327 = vst [vmem:[#allocation2 + $0x129] sm:$0xff] %v1295
        %1328 = vst [vmem:[#allocation2 + $0x139] sm:$0xff] %v1296
        %1329 = vst [vmem:[#allocation2 + $0x141] sm:$0xff] %v1297
        %1330 = vst [vmem:[#allocation2 + $0x151] sm:$0xff] %v1298
        %1331 = vst [vmem:[#allocation2 + $0x159] sm:$0xff] %v1299
        %1332 = vst [vmem:[#allocation2 + $0x169] sm:$0xff] %v1300
        %1333 = vst [vmem:[#allocation2 + $0x171] sm:$0xff] %v1301
        %v1334 = vld [vmem:[#allocation2] sm:$0xff]
        %v1335 = vld [vmem:[#allocation2 + $0x8] sm:$0xff]
        %v1336 = vld [vmem:[#allocation2 + $0x18] sm:$0xff]
        %v1337 = vld [vmem:[#allocation2 + $0x20] sm:$0xff]
        %v1338 = vld [vmem:[#allocation2 + $0x30] sm:$0xff]
        %v1339 = vld [vmem:[#allocation2 + $0x38] sm:$0xff]
        %v1340 = vld [vmem:[#allocation2 + $0x48] sm:$0xff]
        %v1341 = vld [vmem:[#allocation2 + $0x50] sm:$0xff]
        %v1342 = vld [vmem:[#allocation2 + $0x60] sm:$0xff]
        %v1343 = vld [vmem:[#allocation2 + $0x68] sm:$0xff]
        %v1344 = vld [vmem:[#allocation2 + $0x78] sm:$0xff]
        %v1345 = vld [vmem:[#allocation2 + $0x80] sm:$0xff]
        %v1346 = vld [vmem:[#allocation2 + $0x90] sm:$0xff]
        %v1347 = vld [vmem:[#allocation2 + $0x98] sm:$0xff]
        %v1348 = vld [vmem:[#allocation2 + $0xa8] sm:$0xff]
        %v1349 = vld [vmem:[#allocation2 + $0xb0] sm:$0xff]
        %v1350 = vld [vmem:[#allocation2 + $0xc0] sm:$0xff]
        %v1351 = vld [vmem:[#allocation2 + $0xc8] sm:$0xff]
        %v1352 = vld [vmem:[#allocation2 + $0xd8] sm:$0xff]
        %v1353 = vld [vmem:[#allocation2 + $0xe0] sm:$0xff]
        %v1354 = vld [vmem:[#allocation2 + $0xf0] sm:$0xff]
        %v1355 = vld [vmem:[#allocation2 + $0xf8] sm:$0xff]
        %v1356 = vld [vmem:[#allocation2 + $0x108] sm:$0xff]
        %v1357 = vld [vmem:[#allocation2 + $0x110] sm:$0xff]
        %v1358 = vld [vmem:[#allocation2 + $0x120] sm:$0xff]
        %v1359 = vld [vmem:[#allocation2 + $0x128] sm:$0xff]
        %v1360 = vld [vmem:[#allocation2 + $0x138] sm:$0xff]
        %v1361 = vld [vmem:[#allocation2 + $0x140] sm:$0xff]
        %v1362 = vld [vmem:[#allocation2 + $0x150] sm:$0xff]
        %v1363 = vld [vmem:[#allocation2 + $0x158] sm:$0xff]
        %v1364 = vld [vmem:[#allocation2 + $0x168] sm:$0xff]
        %v1365 = vld [vmem:[#allocation2 + $0x170] sm:$0xff]
        %v1366 = vld [vmem:[#allocation8] sm:$0xff]
        %v1367 = vld [vmem:[#allocation8 + $0x8] sm:$0xff]
        %v1368 = vld [vmem:[#allocation8 + $0x10] sm:$0xff]
        %v1369 = vld [vmem:[#allocation8 + $0x18] sm:$0xff]
        %v1370 = vld [vmem:[#allocation8 + $0x20] sm:$0xff]
        %v1371 = vld [vmem:[#allocation8 + $0x28] sm:$0xff]
        %v1372 = vld [vmem:[#allocation8 + $0x30] sm:$0xff]
        %v1373 = vld [vmem:[#allocation8 + $0x38] sm:$0xff]
        %v1374 = vld [vmem:[#allocation8 + $0x40] sm:$0xff]
        %v1375 = vld [vmem:[#allocation8 + $0x48] sm:$0xff]
        %v1376 = vld [vmem:[#allocation8 + $0x50] sm:$0xff]
        %v1377 = vld [vmem:[#allocation8 + $0x58] sm:$0xff]
        %v1378 = vld [vmem:[#allocation8 + $0x60] sm:$0xff]
        %v1379 = vld [vmem:[#allocation8 + $0x68] sm:$0xff]
        %v1380 = vld [vmem:[#allocation8 + $0x70] sm:$0xff]
        %v1381 = vld [vmem:[#allocation8 + $0x78] sm:$0xff]
        %v1382 = vld [vmem:[#allocation2 + $0x1] sm:$0xff]
        %v1383 = vld [vmem:[#allocation2 + $0x9] sm:$0xff]
        %v1384 = vld [vmem:[#allocation2 + $0x19] sm:$0xff]
        %v1385 = vld [vmem:[#allocation2 + $0x21] sm:$0xff]
        %v1386 = vld [vmem:[#allocation2 + $0x31] sm:$0xff]
        %v1387 = vld [vmem:[#allocation2 + $0x39] sm:$0xff]
        %v1388 = vld [vmem:[#allocation2 + $0x49] sm:$0xff]
        %v1389 = vld [vmem:[#allocation2 + $0x51] sm:$0xff]
        %v1390 = vld [vmem:[#allocation2 + $0x61] sm:$0xff]
        %v1391 = vld [vmem:[#allocation2 + $0x69] sm:$0xff]
        %v1392 = vld [vmem:[#allocation2 + $0x79] sm:$0xff]
        %v1393 = vld [vmem:[#allocation2 + $0x81] sm:$0xff]
        %v1394 = vld [vmem:[#allocation2 + $0x91] sm:$0xff]
        %v1395 = vld [vmem:[#allocation2 + $0x99] sm:$0xff]
        %v1396 = vld [vmem:[#allocation2 + $0xa9] sm:$0xff]
        %v1397 = vld [vmem:[#allocation2 + $0xb1] sm:$0xff]
        %v1398 = vld [vmem:[#allocation2 + $0xc1] sm:$0xff]
        %v1399 = vld [vmem:[#allocation2 + $0xc9] sm:$0xff]
        %v1400 = vld [vmem:[#allocation2 + $0xd9] sm:$0xff]
        %v1401 = vld [vmem:[#allocation2 + $0xe1] sm:$0xff]
        %v1402 = vld [vmem:[#allocation2 + $0xf1] sm:$0xff]
        %v1403 = vld [vmem:[#allocation2 + $0xf9] sm:$0xff]
        %v1404 = vld [vmem:[#allocation2 + $0x109] sm:$0xff]
        %v1405 = vld [vmem:[#allocation2 + $0x111] sm:$0xff]
        %v1406 = vld [vmem:[#allocation2 + $0x121] sm:$0xff]
        %v1407 = vld [vmem:[#allocation2 + $0x129] sm:$0xff]
        %v1408 = vld [vmem:[#allocation2 + $0x139] sm:$0xff]
        %v1409 = vld [vmem:[#allocation2 + $0x141] sm:$0xff]
        %v1410 = vld [vmem:[#allocation2 + $0x151] sm:$0xff]
        %v1411 = vld [vmem:[#allocation2 + $0x159] sm:$0xff]
        %v1412 = vld [vmem:[#allocation2 + $0x169] sm:$0xff]
        %v1413 = vld [vmem:[#allocation2 + $0x171] sm:$0xff]
        %s1414 = scalar_lea.vmem [#allocation8], 128
        %v1415 = vld [vmem:[%s1414] sm:$0xff]
        %v1416 = vld [vmem:[%s1414 + $0x8] sm:$0xff]
        %v1417 = vld [vmem:[%s1414 + $0x10] sm:$0xff]
        %v1418 = vld [vmem:[%s1414 + $0x18] sm:$0xff]
        %v1419 = vld [vmem:[%s1414 + $0x20] sm:$0xff]
        %v1420 = vld [vmem:[%s1414 + $0x28] sm:$0xff]
        %v1421 = vld [vmem:[%s1414 + $0x30] sm:$0xff]
        %v1422 = vld [vmem:[%s1414 + $0x38] sm:$0xff]
        %v1423 = vld [vmem:[%s1414 + $0x40] sm:$0xff]
        %v1424 = vld [vmem:[%s1414 + $0x48] sm:$0xff]
        %v1425 = vld [vmem:[%s1414 + $0x50] sm:$0xff]
        %v1426 = vld [vmem:[%s1414 + $0x58] sm:$0xff]
        %v1427 = vld [vmem:[%s1414 + $0x60] sm:$0xff]
        %v1428 = vld [vmem:[%s1414 + $0x68] sm:$0xff]
        %v1429 = vld [vmem:[%s1414 + $0x70] sm:$0xff]
        %v1430 = vld [vmem:[%s1414 + $0x78] sm:$0xff]
        %1431 = vmatprep.subr.mxu0 0.0
        %1432 = vmatpush1.msra.mxu0 %v1415
        %1433 = vmatprep.subr.mxu0 0.0
        %1434 = vmatpush1.msra.mxu0 %v1416
        %1435 = vmatprep.subr.mxu0 0.0
        %1436 = vmatpush1.msra.mxu0 %v1417
        %1437 = vmatprep.subr.mxu0 0.0
        %1438 = vmatpush1.msra.mxu0 %v1418
        %1439 = vmatprep.subr.mxu0 0.0
        %1440 = vmatpush1.msra.mxu0 %v1419
        %1441 = vmatprep.subr.mxu0 0.0
        %1442 = vmatpush1.msra.mxu0 %v1420
        %1443 = vmatprep.subr.mxu0 0.0
        %1444 = vmatpush1.msra.mxu0 %v1421
        %1445 = vmatprep.subr.mxu0 0.0
        %1446 = vmatpush1.msra.mxu0 %v1422
        %1447 = vmatprep.subr.mxu0 0.0
        %1448 = vmatpush1.msra.mxu0 %v1423
        %1449 = vmatprep.subr.mxu0 0.0
        %1450 = vmatpush1.msra.mxu0 %v1424
        %1451 = vmatprep.subr.mxu0 0.0
        %1452 = vmatpush1.msra.mxu0 %v1425
        %1453 = vmatprep.subr.mxu0 0.0
        %1454 = vmatpush1.msra.mxu0 %v1426
        %1455 = vmatprep.subr.mxu0 0.0
        %1456 = vmatpush1.msra.mxu0 %v1427
        %1457 = vmatprep.subr.mxu0 0.0
        %1458 = vmatpush1.msra.mxu0 %v1428
        %1459 = vmatprep.subr.mxu0 0.0
        %1460 = vmatpush1.msra.mxu0 %v1429
        %1461 = vmatprep.subr.mxu0 0.0
        %1462 = vmatpush1.msra.mxu0 %v1430
        %1463 = vmatprep.subr.mxu0 0.0
        %1464 = vmatpush1.msra.mxu0 0.0
        %1465 = vmatprep.subr.mxu0 0.0
        %1466 = vmatpush1.msra.mxu0 0.0
        %1467 = vmatprep.subr.mxu0 0.0
        %1468 = vmatpush1.msra.mxu0 0.0
        %1469 = vmatprep.subr.mxu0 0.0
        %1470 = vmatpush1.msra.mxu0 0.0
        %1471 = vmatprep.subr.mxu0 0.0
        %1472 = vmatpush1.msra.mxu0 0.0
        %1473 = vmatprep.subr.mxu0 0.0
        %1474 = vmatpush1.msra.mxu0 0.0
        %1475 = vmatprep.subr.mxu0 0.0
        %1476 = vmatpush1.msra.mxu0 0.0
        %1477 = vmatprep.subr.mxu0 0.0
        %1478 = vmatpush1.msra.mxu0 0.0
        %1479 = vmatprep.subr.mxu0 0.0
        %1480 = vmatpush1.msra.mxu0 0.0
        %1481 = vmatprep.subr.mxu0 0.0
        %1482 = vmatpush1.msra.mxu0 0.0
        %1483 = vmatprep.subr.mxu0 0.0
        %1484 = vmatpush1.msra.mxu0 0.0
        %1485 = vmatprep.subr.mxu0 0.0
        %1486 = vmatpush1.msra.mxu0 0.0
        %1487 = vmatprep.subr.mxu0 0.0
        %1488 = vmatpush1.msra.mxu0 0.0
        %1489 = vmatprep.subr.mxu0 0.0
        %1490 = vmatpush1.msra.mxu0 0.0
        %1491 = vmatprep.subr.mxu0 0.0
        %1492 = vmatpush1.msra.mxu0 0.0
        %1493 = vmatprep.subr.mxu0 0.0
        %1494 = vmatpush1.msra.mxu0 0.0
        %1495 = vmatprep.mubr.f32.mxu0 0.0
        %1496 = vmatmul.mubr.f32.gmra.mrb[0].mxu0 %v1382
        %v1497 = vpop.f32.mrb[0].mxu0
        %v1498 = vadd.f32 0.0, %v1497
        %v1499 = vpop.f32.mrb[0].mxu0
        %1500 = vmatprep.mubr.f32.mxu0 0.0
        %1501 = vmatmul.mubr.f32.gmra.mrb[0].mxu0 %v1383
        %v1502 = vpop.f32.mrb[0].mxu0
        %v1503 = vadd.f32 0.0, %v1502
        %v1504 = vpop.f32.mrb[0].mxu0
        %1505 = vmatprep.mubr.f32.mxu0 0.0
        %1506 = vmatmul.mubr.f32.gmra.mrb[0].mxu0 %v1384
        %v1507 = vpop.f32.mrb[0].mxu0
        %v1508 = vadd.f32 0.0, %v1507
        %v1509 = vpop.f32.mrb[0].mxu0
        %1510 = vmatprep.mubr.f32.mxu0 0.0
        %1511 = vmatmul.mubr.f32.gmra.mrb[0].mxu0 %v1385
        %v1512 = vpop.f32.mrb[0].mxu0
        %v1513 = vadd.f32 0.0, %v1512
        %v1514 = vpop.f32.mrb[0].mxu0
        %1515 = vmatprep.mubr.f32.mxu0 0.0
        %1516 = vmatmul.mubr.f32.gmra.mrb[0].mxu0 %v1386
        %v1517 = vpop.f32.mrb[0].mxu0
        %v1518 = vadd.f32 0.0, %v1517
        %v1519 = vpop.f32.mrb[0].mxu0
        %1520 = vmatprep.mubr.f32.mxu0 0.0
        %1521 = vmatmul.mubr.f32.gmra.mrb[0].mxu0 %v1387
        %v1522 = vpop.f32.mrb[0].mxu0
        %v1523 = vadd.f32 0.0, %v1522
        %v1524 = vpop.f32.mrb[0].mxu0
        %1525 = vmatprep.mubr.f32.mxu0 0.0
        %1526 = vmatmul.mubr.f32.gmra.mrb[0].mxu0 %v1388
        %v1527 = vpop.f32.mrb[0].mxu0
        %v1528 = vadd.f32 0.0, %v1527
        %v1529 = vpop.f32.mrb[0].mxu0
        %1530 = vmatprep.mubr.f32.mxu0 0.0
        %1531 = vmatmul.mubr.f32.gmra.mrb[0].mxu0 %v1389
        %v1532 = vpop.f32.mrb[0].mxu0
        %v1533 = vadd.f32 0.0, %v1532
        %v1534 = vpop.f32.mrb[0].mxu0
        %1535 = vmatprep.mubr.f32.mxu0 0.0
        %1536 = vmatmul.mubr.f32.gmra.mrb[0].mxu0 %v1390
        %v1537 = vpop.f32.mrb[0].mxu0
        %v1538 = vadd.f32 0.0, %v1537
        %v1539 = vpop.f32.mrb[0].mxu0
        %1540 = vmatprep.mubr.f32.mxu0 0.0
        %1541 = vmatmul.mubr.f32.gmra.mrb[0].mxu0 %v1391
        %v1542 = vpop.f32.mrb[0].mxu0
        %v1543 = vadd.f32 0.0, %v1542
        %v1544 = vpop.f32.mrb[0].mxu0
        %1545 = vmatprep.mubr.f32.mxu0 0.0
        %1546 = vmatmul.mubr.f32.gmra.mrb[0].mxu0 %v1392
        %v1547 = vpop.f32.mrb[0].mxu0
        %v1548 = vadd.f32 0.0, %v1547
        %v1549 = vpop.f32.mrb[0].mxu0
        %1550 = vmatprep.mubr.f32.mxu0 0.0
        %1551 = vmatmul.mubr.f32.gmra.mrb[0].mxu0 %v1393
        %v1552 = vpop.f32.mrb[0].mxu0
        %v1553 = vadd.f32 0.0, %v1552
        %v1554 = vpop.f32.mrb[0].mxu0
        %1555 = vmatprep.mubr.f32.mxu0 0.0
        %1556 = vmatmul.mubr.f32.gmra.mrb[0].mxu0 %v1394
        %v1557 = vpop.f32.mrb[0].mxu0
        %v1558 = vadd.f32 0.0, %v1557
        %v1559 = vpop.f32.mrb[0].mxu0
        %1560 = vmatprep.mubr.f32.mxu0 0.0
        %1561 = vmatmul.mubr.f32.gmra.mrb[0].mxu0 %v1395
        %v1562 = vpop.f32.mrb[0].mxu0
        %v1563 = vadd.f32 0.0, %v1562
        %v1564 = vpop.f32.mrb[0].mxu0
        %1565 = vmatprep.mubr.f32.mxu0 0.0
        %1566 = vmatmul.mubr.f32.gmra.mrb[0].mxu0 %v1396
        %v1567 = vpop.f32.mrb[0].mxu0
        %v1568 = vadd.f32 0.0, %v1567
        %v1569 = vpop.f32.mrb[0].mxu0
        %1570 = vmatprep.mubr.f32.mxu0 0.0
        %1571 = vmatmul.mubr.f32.gmra.mrb[0].mxu0 %v1397
        %v1572 = vpop.f32.mrb[0].mxu0
        %v1573 = vadd.f32 0.0, %v1572
        %v1574 = vpop.f32.mrb[0].mxu0
        %1575 = vmatprep.mubr.f32.mxu0 0.0
        %1576 = vmatmul.mubr.f32.gmra.mrb[0].mxu0 %v1398
        %v1577 = vpop.f32.mrb[0].mxu0
        %v1578 = vadd.f32 0.0, %v1577
        %v1579 = vpop.f32.mrb[0].mxu0
        %1580 = vmatprep.mubr.f32.mxu0 0.0
        %1581 = vmatmul.mubr.f32.gmra.mrb[0].mxu0 %v1399
        %v1582 = vpop.f32.mrb[0].mxu0
        %v1583 = vadd.f32 0.0, %v1582
        %v1584 = vpop.f32.mrb[0].mxu0
        %1585 = vmatprep.mubr.f32.mxu0 0.0
        %1586 = vmatmul.mubr.f32.gmra.mrb[0].mxu0 %v1400
        %v1587 = vpop.f32.mrb[0].mxu0
        %v1588 = vadd.f32 0.0, %v1587
        %v1589 = vpop.f32.mrb[0].mxu0
        %1590 = vmatprep.mubr.f32.mxu0 0.0
        %1591 = vmatmul.mubr.f32.gmra.mrb[0].mxu0 %v1401
        %v1592 = vpop.f32.mrb[0].mxu0
        %v1593 = vadd.f32 0.0, %v1592
        %v1594 = vpop.f32.mrb[0].mxu0
        %1595 = vmatprep.mubr.f32.mxu0 0.0
        %1596 = vmatmul.mubr.f32.gmra.mrb[0].mxu0 %v1402
        %v1597 = vpop.f32.mrb[0].mxu0
        %v1598 = vadd.f32 0.0, %v1597
        %v1599 = vpop.f32.mrb[0].mxu0
        %1600 = vmatprep.mubr.f32.mxu0 0.0
        %1601 = vmatmul.mubr.f32.gmra.mrb[0].mxu0 %v1403
        %v1602 = vpop.f32.mrb[0].mxu0
        %v1603 = vadd.f32 0.0, %v1602
        %v1604 = vpop.f32.mrb[0].mxu0
        %1605 = vmatprep.mubr.f32.mxu0 0.0
        %1606 = vmatmul.mubr.f32.gmra.mrb[0].mxu0 %v1404
        %v1607 = vpop.f32.mrb[0].mxu0
        %v1608 = vadd.f32 0.0, %v1607
        %v1609 = vpop.f32.mrb[0].mxu0
        %1610 = vmatprep.mubr.f32.mxu0 0.0
        %1611 = vmatmul.mubr.f32.gmra.mrb[0].mxu0 %v1405
        %v1612 = vpop.f32.mrb[0].mxu0
        %v1613 = vadd.f32 0.0, %v1612
        %v1614 = vpop.f32.mrb[0].mxu0
        %1615 = vmatprep.mubr.f32.mxu0 0.0
        %1616 = vmatmul.mubr.f32.gmra.mrb[0].mxu0 %v1406
        %v1617 = vpop.f32.mrb[0].mxu0
        %v1618 = vadd.f32 0.0, %v1617
        %v1619 = vpop.f32.mrb[0].mxu0
        %1620 = vmatprep.mubr.f32.mxu0 0.0
        %1621 = vmatmul.mubr.f32.gmra.mrb[0].mxu0 %v1407
        %v1622 = vpop.f32.mrb[0].mxu0
        %v1623 = vadd.f32 0.0, %v1622
        %v1624 = vpop.f32.mrb[0].mxu0
        %1625 = vmatprep.mubr.f32.mxu0 0.0
        %1626 = vmatmul.mubr.f32.gmra.mrb[0].mxu0 %v1408
        %v1627 = vpop.f32.mrb[0].mxu0
        %v1628 = vadd.f32 0.0, %v1627
        %v1629 = vpop.f32.mrb[0].mxu0
        %1630 = vmatprep.mubr.f32.mxu0 0.0
        %1631 = vmatmul.mubr.f32.gmra.mrb[0].mxu0 %v1409
        %v1632 = vpop.f32.mrb[0].mxu0
        %v1633 = vadd.f32 0.0, %v1632
        %v1634 = vpop.f32.mrb[0].mxu0
        %1635 = vmatprep.mubr.f32.mxu0 0.0
        %1636 = vmatmul.mubr.f32.gmra.mrb[0].mxu0 %v1410
        %v1637 = vpop.f32.mrb[0].mxu0
        %v1638 = vadd.f32 0.0, %v1637
        %v1639 = vpop.f32.mrb[0].mxu0
        %1640 = vmatprep.mubr.f32.mxu0 0.0
        %1641 = vmatmul.mubr.f32.gmra.mrb[0].mxu0 %v1411
        %v1642 = vpop.f32.mrb[0].mxu0
        %v1643 = vadd.f32 0.0, %v1642
        %v1644 = vpop.f32.mrb[0].mxu0
        %1645 = vmatprep.mubr.f32.mxu0 0.0
        %1646 = vmatmul.mubr.f32.gmra.mrb[0].mxu0 %v1412
        %v1647 = vpop.f32.mrb[0].mxu0
        %v1648 = vadd.f32 0.0, %v1647
        %v1649 = vpop.f32.mrb[0].mxu0
        %1650 = vmatprep.mubr.f32.mxu0 0.0
        %1651 = vmatmul.mubr.f32.gmra.mrb[0].mxu0 %v1413
        %v1652 = vpop.f32.mrb[0].mxu0
        %v1653 = vadd.f32 0.0, %v1652
        %v1654 = vpop.f32.mrb[0].mxu0
        %1655 = vdwg.mxu0
        %1656 = vmatprep.subr.mxu0 0.0
        %1657 = vmatpush1.msra.mxu0 %v1366
        %1658 = vmatprep.subr.mxu0 0.0
        %1659 = vmatpush1.msra.mxu0 %v1367
        %1660 = vmatprep.subr.mxu0 0.0
        %1661 = vmatpush1.msra.mxu0 %v1368
        %1662 = vmatprep.subr.mxu0 0.0
        %1663 = vmatpush1.msra.mxu0 %v1369
        %1664 = vmatprep.subr.mxu0 0.0
        %1665 = vmatpush1.msra.mxu0 %v1370
        %1666 = vmatprep.subr.mxu0 0.0
        %1667 = vmatpush1.msra.mxu0 %v1371
        %1668 = vmatprep.subr.mxu0 0.0
        %1669 = vmatpush1.msra.mxu0 %v1372
        %1670 = vmatprep.subr.mxu0 0.0
        %1671 = vmatpush1.msra.mxu0 %v1373
        %1672 = vmatprep.subr.mxu0 0.0
        %1673 = vmatpush1.msra.mxu0 %v1374
        %1674 = vmatprep.subr.mxu0 0.0
        %1675 = vmatpush1.msra.mxu0 %v1375
        %1676 = vmatprep.subr.mxu0 0.0
        %1677 = vmatpush1.msra.mxu0 %v1376
        %1678 = vmatprep.subr.mxu0 0.0
        %1679 = vmatpush1.msra.mxu0 %v1377
        %1680 = vmatprep.subr.mxu0 0.0
        %1681 = vmatpush1.msra.mxu0 %v1378
        %1682 = vmatprep.subr.mxu0 0.0
        %1683 = vmatpush1.msra.mxu0 %v1379
        %1684 = vmatprep.subr.mxu0 0.0
        %1685 = vmatpush1.msra.mxu0 %v1380
        %1686 = vmatprep.subr.mxu0 0.0
        %1687 = vmatpush1.msra.mxu0 %v1381
        %1688 = vmatprep.subr.mxu0 0.0
        %1689 = vmatpush1.msra.mxu0 0.0
        %1690 = vmatprep.subr.mxu0 0.0
        %1691 = vmatpush1.msra.mxu0 0.0
        %1692 = vmatprep.subr.mxu0 0.0
        %1693 = vmatpush1.msra.mxu0 0.0
        %1694 = vmatprep.subr.mxu0 0.0
        %1695 = vmatpush1.msra.mxu0 0.0
        %1696 = vmatprep.subr.mxu0 0.0
        %1697 = vmatpush1.msra.mxu0 0.0
        %1698 = vmatprep.subr.mxu0 0.0
        %1699 = vmatpush1.msra.mxu0 0.0
        %1700 = vmatprep.subr.mxu0 0.0
        %1701 = vmatpush1.msra.mxu0 0.0
        %1702 = vmatprep.subr.mxu0 0.0
        %1703 = vmatpush1.msra.mxu0 0.0
        %1704 = vmatprep.subr.mxu0 0.0
        %1705 = vmatpush1.msra.mxu0 0.0
        %1706 = vmatprep.subr.mxu0 0.0
        %1707 = vmatpush1.msra.mxu0 0.0
        %1708 = vmatprep.subr.mxu0 0.0
        %1709 = vmatpush1.msra.mxu0 0.0
        %1710 = vmatprep.subr.mxu0 0.0
        %1711 = vmatpush1.msra.mxu0 0.0
        %1712 = vmatprep.subr.mxu0 0.0
        %1713 = vmatpush1.msra.mxu0 0.0
        %1714 = vmatprep.subr.mxu0 0.0
        %1715 = vmatpush1.msra.mxu0 0.0
        %1716 = vmatprep.subr.mxu0 0.0
        %1717 = vmatpush1.msra.mxu0 0.0
        %1718 = vmatprep.subr.mxu0 0.0
        %1719 = vmatpush1.msra.mxu0 0.0
        %1720 = vmatprep.mubr.f32.mxu0 0.0
        %1721 = vmatmul.mubr.f32.gmra.mrb[0].mxu0 %v1334
        %v1722 = vpop.f32.mrb[0].mxu0
        %v1723 = vadd.f32 %v1498, %v1722
        %v1724 = vpop.f32.mrb[0].mxu0
        %1725 = vmatprep.mubr.f32.mxu0 0.0
        %1726 = vmatmul.mubr.f32.gmra.mrb[0].mxu0 %v1335
        %v1727 = vpop.f32.mrb[0].mxu0
        %v1728 = vadd.f32 %v1503, %v1727
        %v1729 = vpop.f32.mrb[0].mxu0
        %1730 = vmatprep.mubr.f32.mxu0 0.0
        %1731 = vmatmul.mubr.f32.gmra.mrb[0].mxu0 %v1336
        %v1732 = vpop.f32.mrb[0].mxu0
        %v1733 = vadd.f32 %v1508, %v1732
        %v1734 = vpop.f32.mrb[0].mxu0
        %1735 = vmatprep.mubr.f32.mxu0 0.0
        %1736 = vmatmul.mubr.f32.gmra.mrb[0].mxu0 %v1337
        %v1737 = vpop.f32.mrb[0].mxu0
        %v1738 = vadd.f32 %v1513, %v1737
        %v1739 = vpop.f32.mrb[0].mxu0
        %1740 = vmatprep.mubr.f32.mxu0 0.0
        %1741 = vmatmul.mubr.f32.gmra.mrb[0].mxu0 %v1338
        %v1742 = vpop.f32.mrb[0].mxu0
        %v1743 = vadd.f32 %v1518, %v1742
        %v1744 = vpop.f32.mrb[0].mxu0
        %1745 = vmatprep.mubr.f32.mxu0 0.0
        %1746 = vmatmul.mubr.f32.gmra.mrb[0].mxu0 %v1339
        %v1747 = vpop.f32.mrb[0].mxu0
        %v1748 = vadd.f32 %v1523, %v1747
        %v1749 = vpop.f32.mrb[0].mxu0
        %1750 = vmatprep.mubr.f32.mxu0 0.0
        %1751 = vmatmul.mubr.f32.gmra.mrb[0].mxu0 %v1340
        %v1752 = vpop.f32.mrb[0].mxu0
        %v1753 = vadd.f32 %v1528, %v1752
        %v1754 = vpop.f32.mrb[0].mxu0
        %1755 = vmatprep.mubr.f32.mxu0 0.0
        %1756 = vmatmul.mubr.f32.gmra.mrb[0].mxu0 %v1341
        %v1757 = vpop.f32.mrb[0].mxu0
        %v1758 = vadd.f32 %v1533, %v1757
        %v1759 = vpop.f32.mrb[0].mxu0
        %1760 = vmatprep.mubr.f32.mxu0 0.0
        %1761 = vmatmul.mubr.f32.gmra.mrb[0].mxu0 %v1342
        %v1762 = vpop.f32.mrb[0].mxu0
        %v1763 = vadd.f32 %v1538, %v1762
        %v1764 = vpop.f32.mrb[0].mxu0
        %1765 = vmatprep.mubr.f32.mxu0 0.0
        %1766 = vmatmul.mubr.f32.gmra.mrb[0].mxu0 %v1343
        %v1767 = vpop.f32.mrb[0].mxu0
        %v1768 = vadd.f32 %v1543, %v1767
        %v1769 = vpop.f32.mrb[0].mxu0
        %1770 = vmatprep.mubr.f32.mxu0 0.0
        %1771 = vmatmul.mubr.f32.gmra.mrb[0].mxu0 %v1344
        %v1772 = vpop.f32.mrb[0].mxu0
        %v1773 = vadd.f32 %v1548, %v1772
        %v1774 = vpop.f32.mrb[0].mxu0
        %1775 = vmatprep.mubr.f32.mxu0 0.0
        %1776 = vmatmul.mubr.f32.gmra.mrb[0].mxu0 %v1345
        %v1777 = vpop.f32.mrb[0].mxu0
        %v1778 = vadd.f32 %v1553, %v1777
        %v1779 = vpop.f32.mrb[0].mxu0
        %1780 = vmatprep.mubr.f32.mxu0 0.0
        %1781 = vmatmul.mubr.f32.gmra.mrb[0].mxu0 %v1346
        %v1782 = vpop.f32.mrb[0].mxu0
        %v1783 = vadd.f32 %v1558, %v1782
        %v1784 = vpop.f32.mrb[0].mxu0
        %1785 = vmatprep.mubr.f32.mxu0 0.0
        %1786 = vmatmul.mubr.f32.gmra.mrb[0].mxu0 %v1347
        %v1787 = vpop.f32.mrb[0].mxu0
        %v1788 = vadd.f32 %v1563, %v1787
        %v1789 = vpop.f32.mrb[0].mxu0
        %1790 = vmatprep.mubr.f32.mxu0 0.0
        %1791 = vmatmul.mubr.f32.gmra.mrb[0].mxu0 %v1348
        %v1792 = vpop.f32.mrb[0].mxu0
        %v1793 = vadd.f32 %v1568, %v1792
        %v1794 = vpop.f32.mrb[0].mxu0
        %1795 = vmatprep.mubr.f32.mxu0 0.0
        %1796 = vmatmul.mubr.f32.gmra.mrb[0].mxu0 %v1349
        %v1797 = vpop.f32.mrb[0].mxu0
        %v1798 = vadd.f32 %v1573, %v1797
        %v1799 = vpop.f32.mrb[0].mxu0
        %1800 = vmatprep.mubr.f32.mxu0 0.0
        %1801 = vmatmul.mubr.f32.gmra.mrb[0].mxu0 %v1350
        %v1802 = vpop.f32.mrb[0].mxu0
        %v1803 = vadd.f32 %v1578, %v1802
        %v1804 = vpop.f32.mrb[0].mxu0
        %1805 = vmatprep.mubr.f32.mxu0 0.0
        %1806 = vmatmul.mubr.f32.gmra.mrb[0].mxu0 %v1351
        %v1807 = vpop.f32.mrb[0].mxu0
        %v1808 = vadd.f32 %v1583, %v1807
        %v1809 = vpop.f32.mrb[0].mxu0
        %1810 = vmatprep.mubr.f32.mxu0 0.0
        %1811 = vmatmul.mubr.f32.gmra.mrb[0].mxu0 %v1352
        %v1812 = vpop.f32.mrb[0].mxu0
        %v1813 = vadd.f32 %v1588, %v1812
        %v1814 = vpop.f32.mrb[0].mxu0
        %1815 = vmatprep.mubr.f32.mxu0 0.0
        %1816 = vmatmul.mubr.f32.gmra.mrb[0].mxu0 %v1353
        %v1817 = vpop.f32.mrb[0].mxu0
        %v1818 = vadd.f32 %v1593, %v1817
        %v1819 = vpop.f32.mrb[0].mxu0
        %1820 = vmatprep.mubr.f32.mxu0 0.0
        %1821 = vmatmul.mubr.f32.gmra.mrb[0].mxu0 %v1354
        %v1822 = vpop.f32.mrb[0].mxu0
        %v1823 = vadd.f32 %v1598, %v1822
        %v1824 = vpop.f32.mrb[0].mxu0
        %1825 = vmatprep.mubr.f32.mxu0 0.0
        %1826 = vmatmul.mubr.f32.gmra.mrb[0].mxu0 %v1355
        %v1827 = vpop.f32.mrb[0].mxu0
        %v1828 = vadd.f32 %v1603, %v1827
        %v1829 = vpop.f32.mrb[0].mxu0
        %1830 = vmatprep.mubr.f32.mxu0 0.0
        %1831 = vmatmul.mubr.f32.gmra.mrb[0].mxu0 %v1356
        %v1832 = vpop.f32.mrb[0].mxu0
        %v1833 = vadd.f32 %v1608, %v1832
        %v1834 = vpop.f32.mrb[0].mxu0
        %1835 = vmatprep.mubr.f32.mxu0 0.0
        %1836 = vmatmul.mubr.f32.gmra.mrb[0].mxu0 %v1357
        %v1837 = vpop.f32.mrb[0].mxu0
        %v1838 = vadd.f32 %v1613, %v1837
        %v1839 = vpop.f32.mrb[0].mxu0
        %1840 = vmatprep.mubr.f32.mxu0 0.0
        %1841 = vmatmul.mubr.f32.gmra.mrb[0].mxu0 %v1358
        %v1842 = vpop.f32.mrb[0].mxu0
        %v1843 = vadd.f32 %v1618, %v1842
        %v1844 = vpop.f32.mrb[0].mxu0
        %1845 = vmatprep.mubr.f32.mxu0 0.0
        %1846 = vmatmul.mubr.f32.gmra.mrb[0].mxu0 %v1359
        %v1847 = vpop.f32.mrb[0].mxu0
        %v1848 = vadd.f32 %v1623, %v1847
        %v1849 = vpop.f32.mrb[0].mxu0
        %1850 = vmatprep.mubr.f32.mxu0 0.0
        %1851 = vmatmul.mubr.f32.gmra.mrb[0].mxu0 %v1360
        %v1852 = vpop.f32.mrb[0].mxu0
        %v1853 = vadd.f32 %v1628, %v1852
        %v1854 = vpop.f32.mrb[0].mxu0
        %1855 = vmatprep.mubr.f32.mxu0 0.0
        %1856 = vmatmul.mubr.f32.gmra.mrb[0].mxu0 %v1361
        %v1857 = vpop.f32.mrb[0].mxu0
        %v1858 = vadd.f32 %v1633, %v1857
        %v1859 = vpop.f32.mrb[0].mxu0
        %1860 = vmatprep.mubr.f32.mxu0 0.0
        %1861 = vmatmul.mubr.f32.gmra.mrb[0].mxu0 %v1362
        %v1862 = vpop.f32.mrb[0].mxu0
        %v1863 = vadd.f32 %v1638, %v1862
        %v1864 = vpop.f32.mrb[0].mxu0
        %1865 = vmatprep.mubr.f32.mxu0 0.0
        %1866 = vmatmul.mubr.f32.gmra.mrb[0].mxu0 %v1363
        %v1867 = vpop.f32.mrb[0].mxu0
        %v1868 = vadd.f32 %v1643, %v1867
        %v1869 = vpop.f32.mrb[0].mxu0
        %1870 = vmatprep.mubr.f32.mxu0 0.0
        %1871 = vmatmul.mubr.f32.gmra.mrb[0].mxu0 %v1364
        %v1872 = vpop.f32.mrb[0].mxu0
        %v1873 = vadd.f32 %v1648, %v1872
        %v1874 = vpop.f32.mrb[0].mxu0
        %1875 = vmatprep.mubr.f32.mxu0 0.0
        %1876 = vmatmul.mubr.f32.gmra.mrb[0].mxu0 %v1365
        %v1877 = vpop.f32.mrb[0].mxu0
        %v1878 = vadd.f32 %v1653, %v1877
        %v1879 = vpop.f32.mrb[0].mxu0
        %1880 = vdwg.mxu0
        %v1881 = vld [vmem:[#allocation2 + $0x2] sm:$0xff]
        %v1882 = vld [vmem:[#allocation2 + $0xa] sm:$0xff]
        %v1883 = vld [vmem:[#allocation2 + $0x1a] sm:$0xff]
        %v1884 = vld [vmem:[#allocation2 + $0x22] sm:$0xff]
        %v1885 = vld [vmem:[#allocation2 + $0x32] sm:$0xff]
        %v1886 = vld [vmem:[#allocation2 + $0x3a] sm:$0xff]
        %v1887 = vld [vmem:[#allocation2 + $0x4a] sm:$0xff]
        %v1888 = vld [vmem:[#allocation2 + $0x52] sm:$0xff]
        %v1889 = vld [vmem:[#allocation2 + $0x62] sm:$0xff]
        %v1890 = vld [vmem:[#allocation2 + $0x6a] sm:$0xff]
        %v1891 = vld [vmem:[#allocation2 + $0x7a] sm:$0xff]
        %v1892 = vld [vmem:[#allocation2 + $0x82] sm:$0xff]
        %v1893 = vld [vmem:[#allocation2 + $0x92] sm:$0xff]
        %v1894 = vld [vmem:[#allocation2 + $0x9a] sm:$0xff]
        %v1895 = vld [vmem:[#allocation2 + $0xaa] sm:$0xff]
        %v1896 = vld [vmem:[#allocation2 + $0xb2] sm:$0xff]
        %v1897 = vld [vmem:[#allocation2 + $0xc2] sm:$0xff]
        %v1898 = vld [vmem:[#allocation2 + $0xca] sm:$0xff]
        %v1899 = vld [vmem:[#allocation2 + $0xda] sm:$0xff]
        %v1900 = vld [vmem:[#allocation2 + $0xe2] sm:$0xff]
        %v1901 = vld [vmem:[#allocation2 + $0xf2] sm:$0xff]
        %v1902 = vld [vmem:[#allocation2 + $0xfa] sm:$0xff]
        %v1903 = vld [vmem:[#allocation2 + $0x10a] sm:$0xff]
        %v1904 = vld [vmem:[#allocation2 + $0x112] sm:$0xff]
        %v1905 = vld [vmem:[#allocation2 + $0x122] sm:$0xff]
        %v1906 = vld [vmem:[#allocation2 + $0x12a] sm:$0xff]
        %v1907 = vld [vmem:[#allocation2 + $0x13a] sm:$0xff]
        %v1908 = vld [vmem:[#allocation2 + $0x142] sm:$0xff]
        %v1909 = vld [vmem:[#allocation2 + $0x152] sm:$0xff]
        %v1910 = vld [vmem:[#allocation2 + $0x15a] sm:$0xff]
        %v1911 = vld [vmem:[#allocation2 + $0x16a] sm:$0xff]
        %v1912 = vld [vmem:[#allocation2 + $0x172] sm:$0xff]
        %s1913 = scalar_lea.vmem [#allocation8], 256
        %v1914 = vld [vmem:[%s1913] sm:$0xff]
        %v1915 = vld [vmem:[%s1913 + $0x8] sm:$0xff]
        %v1916 = vld [vmem:[%s1913 + $0x10] sm:$0xff]
        %v1917 = vld [vmem:[%s1913 + $0x18] sm:$0xff]
        %v1918 = vld [vmem:[%s1913 + $0x20] sm:$0xff]
        %v1919 = vld [vmem:[%s1913 + $0x28] sm:$0xff]
        %v1920 = vld [vmem:[%s1913 + $0x30] sm:$0xff]
        %v1921 = vld [vmem:[%s1913 + $0x38] sm:$0xff]
        %v1922 = vld [vmem:[%s1913 + $0x40] sm:$0xff]
        %v1923 = vld [vmem:[%s1913 + $0x48] sm:$0xff]
        %v1924 = vld [vmem:[%s1913 + $0x50] sm:$0xff]
        %v1925 = vld [vmem:[%s1913 + $0x58] sm:$0xff]
        %v1926 = vld [vmem:[%s1913 + $0x60] sm:$0xff]
        %v1927 = vld [vmem:[%s1913 + $0x68] sm:$0xff]
        %v1928 = vld [vmem:[%s1913 + $0x70] sm:$0xff]
        %v1929 = vld [vmem:[%s1913 + $0x78] sm:$0xff]
        %1930 = vmatprep.subr.mxu0 0.0
        %1931 = vmatpush1.msra.mxu0 %v1914
        %1932 = vmatprep.subr.mxu0 0.0
        %1933 = vmatpush1.msra.mxu0 %v1915
        %1934 = vmatprep.subr.mxu0 0.0
        %1935 = vmatpush1.msra.mxu0 %v1916
        %1936 = vmatprep.subr.mxu0 0.0
        %1937 = vmatpush1.msra.mxu0 %v1917
        %1938 = vmatprep.subr.mxu0 0.0
        %1939 = vmatpush1.msra.mxu0 %v1918
        %1940 = vmatprep.subr.mxu0 0.0
        %1941 = vmatpush1.msra.mxu0 %v1919
        %1942 = vmatprep.subr.mxu0 0.0
        %1943 = vmatpush1.msra.mxu0 %v1920
        %1944 = vmatprep.subr.mxu0 0.0
        %1945 = vmatpush1.msra.mxu0 %v1921
        %1946 = vmatprep.subr.mxu0 0.0
        %1947 = vmatpush1.msra.mxu0 %v1922
        %1948 = vmatprep.subr.mxu0 0.0
        %1949 = vmatpush1.msra.mxu0 %v1923
        %1950 = vmatprep.subr.mxu0 0.0
        %1951 = vmatpush1.msra.mxu0 %v1924
        %1952 = vmatprep.subr.mxu0 0.0
        %1953 = vmatpush1.msra.mxu0 %v1925
        %1954 = vmatprep.subr.mxu0 0.0
        %1955 = vmatpush1.msra.mxu0 %v1926
        %1956 = vmatprep.subr.mxu0 0.0
        %1957 = vmatpush1.msra.mxu0 %v1927
        %1958 = vmatprep.subr.mxu0 0.0
        %1959 = vmatpush1.msra.mxu0 %v1928
        %1960 = vmatprep.subr.mxu0 0.0
        %1961 = vmatpush1.msra.mxu0 %v1929
        %1962 = vmatprep.subr.mxu0 0.0
        %1963 = vmatpush1.msra.mxu0 0.0
        %1964 = vmatprep.subr.mxu0 0.0
        %1965 = vmatpush1.msra.mxu0 0.0
        %1966 = vmatprep.subr.mxu0 0.0
        %1967 = vmatpush1.msra.mxu0 0.0
        %1968 = vmatprep.subr.mxu0 0.0
        %1969 = vmatpush1.msra.mxu0 0.0
        %1970 = vmatprep.subr.mxu0 0.0
        %1971 = vmatpush1.msra.mxu0 0.0
        %1972 = vmatprep.subr.mxu0 0.0
        %1973 = vmatpush1.msra.mxu0 0.0
        %1974 = vmatprep.subr.mxu0 0.0
        %1975 = vmatpush1.msra.mxu0 0.0
        %1976 = vmatprep.subr.mxu0 0.0
        %1977 = vmatpush1.msra.mxu0 0.0
        %1978 = vmatprep.subr.mxu0 0.0
        %1979 = vmatpush1.msra.mxu0 0.0
        %1980 = vmatprep.subr.mxu0 0.0
        %1981 = vmatpush1.msra.mxu0 0.0
        %1982 = vmatprep.subr.mxu0 0.0
        %1983 = vmatpush1.msra.mxu0 0.0
        %1984 = vmatprep.subr.mxu0 0.0
        %1985 = vmatpush1.msra.mxu0 0.0
        %1986 = vmatprep.subr.mxu0 0.0
        %1987 = vmatpush1.msra.mxu0 0.0
        %1988 = vmatprep.subr.mxu0 0.0
        %1989 = vmatpush1.msra.mxu0 0.0
        %1990 = vmatprep.subr.mxu0 0.0
        %1991 = vmatpush1.msra.mxu0 0.0
        %1992 = vmatprep.subr.mxu0 0.0
        %1993 = vmatpush1.msra.mxu0 0.0
        %1994 = vmatprep.mubr.f32.mxu0 0.0
        %1995 = vmatmul.mubr.f32.gmra.mrb[0].mxu0 %v1881
        %v1996 = vpop.f32.mrb[0].mxu0
        %v1997 = vadd.f32 0.0, %v1996
        %v1998 = vpop.f32.mrb[0].mxu0
        %1999 = vmatprep.mubr.f32.mxu0 0.0
        %2000 = vmatmul.mubr.f32.gmra.mrb[0].mxu0 %v1882
        %v2001 = vpop.f32.mrb[0].mxu0
        %v2002 = vadd.f32 0.0, %v2001
        %v2003 = vpop.f32.mrb[0].mxu0
        %2004 = vmatprep.mubr.f32.mxu0 0.0
        %2005 = vmatmul.mubr.f32.gmra.mrb[0].mxu0 %v1883
        %v2006 = vpop.f32.mrb[0].mxu0
        %v2007 = vadd.f32 0.0, %v2006
        %v2008 = vpop.f32.mrb[0].mxu0
        %2009 = vmatprep.mubr.f32.mxu0 0.0
        %2010 = vmatmul.mubr.f32.gmra.mrb[0].mxu0 %v1884
        %v2011 = vpop.f32.mrb[0].mxu0
        %v2012 = vadd.f32 0.0, %v2011
        %v2013 = vpop.f32.mrb[0].mxu0
        %2014 = vmatprep.mubr.f32.mxu0 0.0
        %2015 = vmatmul.mubr.f32.gmra.mrb[0].mxu0 %v1885
        %v2016 = vpop.f32.mrb[0].mxu0
        %v2017 = vadd.f32 0.0, %v2016
        %v2018 = vpop.f32.mrb[0].mxu0
        %2019 = vmatprep.mubr.f32.mxu0 0.0
        %2020 = vmatmul.mubr.f32.gmra.mrb[0].mxu0 %v1886
        %v2021 = vpop.f32.mrb[0].mxu0
        %v2022 = vadd.f32 0.0, %v2021
        %v2023 = vpop.f32.mrb[0].mxu0
        %2024 = vmatprep.mubr.f32.mxu0 0.0
        %2025 = vmatmul.mubr.f32.gmra.mrb[0].mxu0 %v1887
        %v2026 = vpop.f32.mrb[0].mxu0
        %v2027 = vadd.f32 0.0, %v2026
        %v2028 = vpop.f32.mrb[0].mxu0
        %2029 = vmatprep.mubr.f32.mxu0 0.0
        %2030 = vmatmul.mubr.f32.gmra.mrb[0].mxu0 %v1888
        %v2031 = vpop.f32.mrb[0].mxu0
        %v2032 = vadd.f32 0.0, %v2031
        %v2033 = vpop.f32.mrb[0].mxu0
        %2034 = vmatprep.mubr.f32.mxu0 0.0
        %2035 = vmatmul.mubr.f32.gmra.mrb[0].mxu0 %v1889
        %v2036 = vpop.f32.mrb[0].mxu0
        %v2037 = vadd.f32 0.0, %v2036
        %v2038 = vpop.f32.mrb[0].mxu0
        %2039 = vmatprep.mubr.f32.mxu0 0.0
        %2040 = vmatmul.mubr.f32.gmra.mrb[0].mxu0 %v1890
        %v2041 = vpop.f32.mrb[0].mxu0
        %v2042 = vadd.f32 0.0, %v2041
        %v2043 = vpop.f32.mrb[0].mxu0
        %2044 = vmatprep.mubr.f32.mxu0 0.0
        %2045 = vmatmul.mubr.f32.gmra.mrb[0].mxu0 %v1891
        %v2046 = vpop.f32.mrb[0].mxu0
        %v2047 = vadd.f32 0.0, %v2046
        %v2048 = vpop.f32.mrb[0].mxu0
        %2049 = vmatprep.mubr.f32.mxu0 0.0
        %2050 = vmatmul.mubr.f32.gmra.mrb[0].mxu0 %v1892
        %v2051 = vpop.f32.mrb[0].mxu0
        %v2052 = vadd.f32 0.0, %v2051
        %v2053 = vpop.f32.mrb[0].mxu0
        %2054 = vmatprep.mubr.f32.mxu0 0.0
        %2055 = vmatmul.mubr.f32.gmra.mrb[0].mxu0 %v1893
        %v2056 = vpop.f32.mrb[0].mxu0
        %v2057 = vadd.f32 0.0, %v2056
        %v2058 = vpop.f32.mrb[0].mxu0
        %2059 = vmatprep.mubr.f32.mxu0 0.0
        %2060 = vmatmul.mubr.f32.gmra.mrb[0].mxu0 %v1894
        %v2061 = vpop.f32.mrb[0].mxu0
        %v2062 = vadd.f32 0.0, %v2061
        %v2063 = vpop.f32.mrb[0].mxu0
        %2064 = vmatprep.mubr.f32.mxu0 0.0
        %2065 = vmatmul.mubr.f32.gmra.mrb[0].mxu0 %v1895
        %v2066 = vpop.f32.mrb[0].mxu0
        %v2067 = vadd.f32 0.0, %v2066
        %v2068 = vpop.f32.mrb[0].mxu0
        %2069 = vmatprep.mubr.f32.mxu0 0.0
        %2070 = vmatmul.mubr.f32.gmra.mrb[0].mxu0 %v1896
        %v2071 = vpop.f32.mrb[0].mxu0
        %v2072 = vadd.f32 0.0, %v2071
        %v2073 = vpop.f32.mrb[0].mxu0
        %2074 = vmatprep.mubr.f32.mxu0 0.0
        %2075 = vmatmul.mubr.f32.gmra.mrb[0].mxu0 %v1897
        %v2076 = vpop.f32.mrb[0].mxu0
        %v2077 = vadd.f32 0.0, %v2076
        %v2078 = vpop.f32.mrb[0].mxu0
        %2079 = vmatprep.mubr.f32.mxu0 0.0
        %2080 = vmatmul.mubr.f32.gmra.mrb[0].mxu0 %v1898
        %v2081 = vpop.f32.mrb[0].mxu0
        %v2082 = vadd.f32 0.0, %v2081
        %v2083 = vpop.f32.mrb[0].mxu0
        %2084 = vmatprep.mubr.f32.mxu0 0.0
        %2085 = vmatmul.mubr.f32.gmra.mrb[0].mxu0 %v1899
        %v2086 = vpop.f32.mrb[0].mxu0
        %v2087 = vadd.f32 0.0, %v2086
        %v2088 = vpop.f32.mrb[0].mxu0
        %2089 = vmatprep.mubr.f32.mxu0 0.0
        %2090 = vmatmul.mubr.f32.gmra.mrb[0].mxu0 %v1900
        %v2091 = vpop.f32.mrb[0].mxu0
        %v2092 = vadd.f32 0.0, %v2091
        %v2093 = vpop.f32.mrb[0].mxu0
        %2094 = vmatprep.mubr.f32.mxu0 0.0
        %2095 = vmatmul.mubr.f32.gmra.mrb[0].mxu0 %v1901
        %v2096 = vpop.f32.mrb[0].mxu0
        %v2097 = vadd.f32 0.0, %v2096
        %v2098 = vpop.f32.mrb[0].mxu0
        %2099 = vmatprep.mubr.f32.mxu0 0.0
        %2100 = vmatmul.mubr.f32.gmra.mrb[0].mxu0 %v1902
        %v2101 = vpop.f32.mrb[0].mxu0
        %v2102 = vadd.f32 0.0, %v2101
        %v2103 = vpop.f32.mrb[0].mxu0
        %2104 = vmatprep.mubr.f32.mxu0 0.0
        %2105 = vmatmul.mubr.f32.gmra.mrb[0].mxu0 %v1903
        %v2106 = vpop.f32.mrb[0].mxu0
        %v2107 = vadd.f32 0.0, %v2106
        %v2108 = vpop.f32.mrb[0].mxu0
        %2109 = vmatprep.mubr.f32.mxu0 0.0
        %2110 = vmatmul.mubr.f32.gmra.mrb[0].mxu0 %v1904
        %v2111 = vpop.f32.mrb[0].mxu0
        %v2112 = vadd.f32 0.0, %v2111
        %v2113 = vpop.f32.mrb[0].mxu0
        %2114 = vmatprep.mubr.f32.mxu0 0.0
        %2115 = vmatmul.mubr.f32.gmra.mrb[0].mxu0 %v1905
        %v2116 = vpop.f32.mrb[0].mxu0
        %v2117 = vadd.f32 0.0, %v2116
        %v2118 = vpop.f32.mrb[0].mxu0
        %2119 = vmatprep.mubr.f32.mxu0 0.0
        %2120 = vmatmul.mubr.f32.gmra.mrb[0].mxu0 %v1906
        %v2121 = vpop.f32.mrb[0].mxu0
        %v2122 = vadd.f32 0.0, %v2121
        %v2123 = vpop.f32.mrb[0].mxu0
        %2124 = vmatprep.mubr.f32.mxu0 0.0
        %2125 = vmatmul.mubr.f32.gmra.mrb[0].mxu0 %v1907
        %v2126 = vpop.f32.mrb[0].mxu0
        %v2127 = vadd.f32 0.0, %v2126
        %v2128 = vpop.f32.mrb[0].mxu0
        %2129 = vmatprep.mubr.f32.mxu0 0.0
        %2130 = vmatmul.mubr.f32.gmra.mrb[0].mxu0 %v1908
        %v2131 = vpop.f32.mrb[0].mxu0
        %v2132 = vadd.f32 0.0, %v2131
        %v2133 = vpop.f32.mrb[0].mxu0
        %2134 = vmatprep.mubr.f32.mxu0 0.0
        %2135 = vmatmul.mubr.f32.gmra.mrb[0].mxu0 %v1909
        %v2136 = vpop.f32.mrb[0].mxu0
        %v2137 = vadd.f32 0.0, %v2136
        %v2138 = vpop.f32.mrb[0].mxu0
        %2139 = vmatprep.mubr.f32.mxu0 0.0
        %2140 = vmatmul.mubr.f32.gmra.mrb[0].mxu0 %v1910
        %v2141 = vpop.f32.mrb[0].mxu0
        %v2142 = vadd.f32 0.0, %v2141
        %v2143 = vpop.f32.mrb[0].mxu0
        %2144 = vmatprep.mubr.f32.mxu0 0.0
        %2145 = vmatmul.mubr.f32.gmra.mrb[0].mxu0 %v1911
        %v2146 = vpop.f32.mrb[0].mxu0
        %v2147 = vadd.f32 0.0, %v2146
        %v2148 = vpop.f32.mrb[0].mxu0
        %2149 = vmatprep.mubr.f32.mxu0 0.0
        %2150 = vmatmul.mubr.f32.gmra.mrb[0].mxu0 %v1912
        %v2151 = vpop.f32.mrb[0].mxu0
        %v2152 = vadd.f32 0.0, %v2151
        %v2153 = vpop.f32.mrb[0].mxu0
        %2154 = vdwg.mxu0
        %v2155 = vadd.f32 %v1723, %v1997
        %v2156 = vadd.f32 %v1728, %v2002
        %v2157 = vadd.f32 %v1733, %v2007
        %v2158 = vadd.f32 %v1738, %v2012
        %v2159 = vadd.f32 %v1743, %v2017
        %v2160 = vadd.f32 %v1748, %v2022
        %v2161 = vadd.f32 %v1753, %v2027
        %v2162 = vadd.f32 %v1758, %v2032
        %v2163 = vadd.f32 %v1763, %v2037
        %v2164 = vadd.f32 %v1768, %v2042
        %v2165 = vadd.f32 %v1773, %v2047
        %v2166 = vadd.f32 %v1778, %v2052
        %v2167 = vadd.f32 %v1783, %v2057
        %v2168 = vadd.f32 %v1788, %v2062
        %v2169 = vadd.f32 %v1793, %v2067
        %v2170 = vadd.f32 %v1798, %v2072
        %v2171 = vadd.f32 %v1803, %v2077
        %v2172 = vadd.f32 %v1808, %v2082
        %v2173 = vadd.f32 %v1813, %v2087
        %v2174 = vadd.f32 %v1818, %v2092
        %v2175 = vadd.f32 %v1823, %v2097
        %v2176 = vadd.f32 %v1828, %v2102
        %v2177 = vadd.f32 %v1833, %v2107
        %v2178 = vadd.f32 %v1838, %v2112
        %v2179 = vadd.f32 %v1843, %v2117
        %v2180 = vadd.f32 %v1848, %v2122
        %v2181 = vadd.f32 %v1853, %v2127
        %v2182 = vadd.f32 %v1858, %v2132
        %v2183 = vadd.f32 %v1863, %v2137
        %v2184 = vadd.f32 %v1868, %v2142
        %v2185 = vadd.f32 %v1873, %v2147
        %v2186 = vadd.f32 %v1878, %v2152
        %v2187 = vld [vmem:[%s3 + $0x2] sm:$0x1]
        %v2188 = vlaneseq
        %v2189 = vshrl.u32 %v2188, 7
        %v2190 = vsub.s32 0, %v2189
        %v2191 = vrot.slane %v2187, %v2190
        %v2192 = vmul.f32 %v2155, %v2191
        %v2193 = vmul.f32 %v2156, %v2191
        %v2194 = vmul.f32 %v2157, %v2191
        %v2195 = vmul.f32 %v2158, %v2191
        %v2196 = vmul.f32 %v2159, %v2191
        %v2197 = vmul.f32 %v2160, %v2191
        %v2198 = vmul.f32 %v2161, %v2191
        %v2199 = vmul.f32 %v2162, %v2191
        %v2200 = vmul.f32 %v2163, %v2191
        %v2201 = vmul.f32 %v2164, %v2191
        %v2202 = vmul.f32 %v2165, %v2191
        %v2203 = vmul.f32 %v2166, %v2191
        %v2204 = vmul.f32 %v2167, %v2191
        %v2205 = vmul.f32 %v2168, %v2191
        %v2206 = vmul.f32 %v2169, %v2191
        %v2207 = vmul.f32 %v2170, %v2191
        %v2208 = vmul.f32 %v2171, %v2191
        %v2209 = vmul.f32 %v2172, %v2191
        %v2210 = vmul.f32 %v2173, %v2191
        %v2211 = vmul.f32 %v2174, %v2191
        %v2212 = vmul.f32 %v2175, %v2191
        %v2213 = vmul.f32 %v2176, %v2191
        %v2214 = vmul.f32 %v2177, %v2191
        %v2215 = vmul.f32 %v2178, %v2191
        %v2216 = vmul.f32 %v2179, %v2191
        %v2217 = vmul.f32 %v2180, %v2191
        %v2218 = vmul.f32 %v2181, %v2191
        %v2219 = vmul.f32 %v2182, %v2191
        %v2220 = vmul.f32 %v2183, %v2191
        %v2221 = vmul.f32 %v2184, %v2191
        %v2222 = vmul.f32 %v2185, %v2191
        %v2223 = vmul.f32 %v2186, %v2191
        %v2224 = vld [vmem:[%s3 + $0x3] sm:$0x1]
        %v2225 = vlaneseq
        %v2226 = vshrl.u32 %v2225, 7
        %v2227 = vsub.s32 0, %v2226
        %v2228 = vrot.slane %v2224, %v2227
        %v2229 = vadd.f32 %v2192, %v2228
        %v2230 = vadd.f32 %v2193, %v2228
        %v2231 = vadd.f32 %v2194, %v2228
        %v2232 = vadd.f32 %v2195, %v2228
        %v2233 = vadd.f32 %v2196, %v2228
        %v2234 = vadd.f32 %v2197, %v2228
        %v2235 = vadd.f32 %v2198, %v2228
        %v2236 = vadd.f32 %v2199, %v2228
        %v2237 = vadd.f32 %v2200, %v2228
        %v2238 = vadd.f32 %v2201, %v2228
        %v2239 = vadd.f32 %v2202, %v2228
        %v2240 = vadd.f32 %v2203, %v2228
        %v2241 = vadd.f32 %v2204, %v2228
        %v2242 = vadd.f32 %v2205, %v2228
        %v2243 = vadd.f32 %v2206, %v2228
        %v2244 = vadd.f32 %v2207, %v2228
        %v2245 = vadd.f32 %v2208, %v2228
        %v2246 = vadd.f32 %v2209, %v2228
        %v2247 = vadd.f32 %v2210, %v2228
        %v2248 = vadd.f32 %v2211, %v2228
        %v2249 = vadd.f32 %v2212, %v2228
        %v2250 = vadd.f32 %v2213, %v2228
        %v2251 = vadd.f32 %v2214, %v2228
        %v2252 = vadd.f32 %v2215, %v2228
        %v2253 = vadd.f32 %v2216, %v2228
        %v2254 = vadd.f32 %v2217, %v2228
        %v2255 = vadd.f32 %v2218, %v2228
        %v2256 = vadd.f32 %v2219, %v2228
        %v2257 = vadd.f32 %v2220, %v2228
        %v2258 = vadd.f32 %v2221, %v2228
        %v2259 = vadd.f32 %v2222, %v2228
        %v2260 = vadd.f32 %v2223, %v2228
        %v2261 = vld [vmem:[%s212] sm:$0xff]
        %v2262 = vld [vmem:[%s212 + $0x8] sm:$0xff]
        %v2263 = vld [vmem:[%s212 + $0x10] sm:$0xff]
        %v2264 = vld [vmem:[%s212 + $0x18] sm:$0xff]
        %v2265 = vld [vmem:[%s212 + $0x20] sm:$0xff]
        %v2266 = vld [vmem:[%s212 + $0x28] sm:$0xff]
        %v2267 = vld [vmem:[%s212 + $0x30] sm:$0xff]
        %v2268 = vld [vmem:[%s212 + $0x38] sm:$0xff]
        %v2269 = vld [vmem:[%s212 + $0x40] sm:$0xff]
        %v2270 = vld [vmem:[%s212 + $0x48] sm:$0xff]
        %v2271 = vld [vmem:[%s212 + $0x50] sm:$0xff]
        %v2272 = vld [vmem:[%s212 + $0x58] sm:$0xff]
        %v2273 = vld [vmem:[%s212 + $0x60] sm:$0xff]
        %v2274 = vld [vmem:[%s212 + $0x68] sm:$0xff]
        %v2275 = vld [vmem:[%s212 + $0x70] sm:$0xff]
        %v2276 = vld [vmem:[%s212 + $0x78] sm:$0xff]
        %v2277 = vld [vmem:[%s212 + $0x80] sm:$0xff]
        %v2278 = vld [vmem:[%s212 + $0x88] sm:$0xff]
        %v2279 = vld [vmem:[%s212 + $0x90] sm:$0xff]
        %v2280 = vld [vmem:[%s212 + $0x98] sm:$0xff]
        %v2281 = vld [vmem:[%s212 + $0xa0] sm:$0xff]
        %v2282 = vld [vmem:[%s212 + $0xa8] sm:$0xff]
        %v2283 = vld [vmem:[%s212 + $0xb0] sm:$0xff]
        %v2284 = vld [vmem:[%s212 + $0xb8] sm:$0xff]
        %v2285 = vld [vmem:[%s212 + $0xc0] sm:$0xff]
        %v2286 = vld [vmem:[%s212 + $0xc8] sm:$0xff]
        %v2287 = vld [vmem:[%s212 + $0xd0] sm:$0xff]
        %v2288 = vld [vmem:[%s212 + $0xd8] sm:$0xff]
        %v2289 = vld [vmem:[%s212 + $0xe0] sm:$0xff]
        %v2290 = vld [vmem:[%s212 + $0xe8] sm:$0xff]
        %v2291 = vld [vmem:[%s212 + $0xf0] sm:$0xff]
        %v2292 = vld [vmem:[%s212 + $0xf8] sm:$0xff]
        %v2293 = vadd.f32 %v2229, %v2261
        %v2294 = vadd.f32 %v2230, %v2262
        %v2295 = vadd.f32 %v2231, %v2263
        %v2296 = vadd.f32 %v2232, %v2264
        %v2297 = vadd.f32 %v2233, %v2265
        %v2298 = vadd.f32 %v2234, %v2266
        %v2299 = vadd.f32 %v2235, %v2267
        %v2300 = vadd.f32 %v2236, %v2268
        %v2301 = vadd.f32 %v2237, %v2269
        %v2302 = vadd.f32 %v2238, %v2270
        %v2303 = vadd.f32 %v2239, %v2271
        %v2304 = vadd.f32 %v2240, %v2272
        %v2305 = vadd.f32 %v2241, %v2273
        %v2306 = vadd.f32 %v2242, %v2274
        %v2307 = vadd.f32 %v2243, %v2275
        %v2308 = vadd.f32 %v2244, %v2276
        %v2309 = vadd.f32 %v2245, %v2277
        %v2310 = vadd.f32 %v2246, %v2278
        %v2311 = vadd.f32 %v2247, %v2279
        %v2312 = vadd.f32 %v2248, %v2280
        %v2313 = vadd.f32 %v2249, %v2281
        %v2314 = vadd.f32 %v2250, %v2282
        %v2315 = vadd.f32 %v2251, %v2283
        %v2316 = vadd.f32 %v2252, %v2284
        %v2317 = vadd.f32 %v2253, %v2285
        %v2318 = vadd.f32 %v2254, %v2286
        %v2319 = vadd.f32 %v2255, %v2287
        %v2320 = vadd.f32 %v2256, %v2288
        %v2321 = vadd.f32 %v2257, %v2289
        %v2322 = vadd.f32 %v2258, %v2290
        %v2323 = vadd.f32 %v2259, %v2291
        %v2324 = vadd.f32 %v2260, %v2292
        %v2325 = vmax.f32 %v2293, 0.0
        %v2326 = vmax.f32 %v2294, 0.0
        %v2327 = vmax.f32 %v2295, 0.0
        %v2328 = vmax.f32 %v2296, 0.0
        %v2329 = vmax.f32 %v2297, 0.0
        %v2330 = vmax.f32 %v2298, 0.0
        %v2331 = vmax.f32 %v2299, 0.0
        %v2332 = vmax.f32 %v2300, 0.0
        %v2333 = vmax.f32 %v2301, 0.0
        %v2334 = vmax.f32 %v2302, 0.0
        %v2335 = vmax.f32 %v2303, 0.0
        %v2336 = vmax.f32 %v2304, 0.0
        %v2337 = vmax.f32 %v2305, 0.0
        %v2338 = vmax.f32 %v2306, 0.0
        %v2339 = vmax.f32 %v2307, 0.0
        %v2340 = vmax.f32 %v2308, 0.0
        %v2341 = vmax.f32 %v2309, 0.0
        %v2342 = vmax.f32 %v2310, 0.0
        %v2343 = vmax.f32 %v2311, 0.0
        %v2344 = vmax.f32 %v2312, 0.0
        %v2345 = vmax.f32 %v2313, 0.0
        %v2346 = vmax.f32 %v2314, 0.0
        %v2347 = vmax.f32 %v2315, 0.0
        %v2348 = vmax.f32 %v2316, 0.0
        %v2349 = vmax.f32 %v2317, 0.0
        %v2350 = vmax.f32 %v2318, 0.0
        %v2351 = vmax.f32 %v2319, 0.0
        %v2352 = vmax.f32 %v2320, 0.0
        %v2353 = vmax.f32 %v2321, 0.0
        %v2354 = vmax.f32 %v2322, 0.0
        %v2355 = vmax.f32 %v2323, 0.0
        %v2356 = vmax.f32 %v2324, 0.0
        %2357 = vst [vmem:[%s244] sm:$0xff] %v2325
        %2358 = vst [vmem:[%s244 + $0x8] sm:$0xff] %v2326
        %2359 = vst [vmem:[%s244 + $0x10] sm:$0xff] %v2327
        %2360 = vst [vmem:[%s244 + $0x18] sm:$0xff] %v2328
        %2361 = vst [vmem:[%s244 + $0x20] sm:$0xff] %v2329
        %2362 = vst [vmem:[%s244 + $0x28] sm:$0xff] %v2330
        %2363 = vst [vmem:[%s244 + $0x30] sm:$0xff] %v2331
        %2364 = vst [vmem:[%s244 + $0x38] sm:$0xff] %v2332
        %2365 = vst [vmem:[%s244 + $0x40] sm:$0xff] %v2333
        %2366 = vst [vmem:[%s244 + $0x48] sm:$0xff] %v2334
        %2367 = vst [vmem:[%s244 + $0x50] sm:$0xff] %v2335
        %2368 = vst [vmem:[%s244 + $0x58] sm:$0xff] %v2336
        %2369 = vst [vmem:[%s244 + $0x60] sm:$0xff] %v2337
        %2370 = vst [vmem:[%s244 + $0x68] sm:$0xff] %v2338
        %2371 = vst [vmem:[%s244 + $0x70] sm:$0xff] %v2339
        %2372 = vst [vmem:[%s244 + $0x78] sm:$0xff] %v2340
        %2373 = vst [vmem:[%s244 + $0x80] sm:$0xff] %v2341
        %2374 = vst [vmem:[%s244 + $0x88] sm:$0xff] %v2342
        %2375 = vst [vmem:[%s244 + $0x90] sm:$0xff] %v2343
        %2376 = vst [vmem:[%s244 + $0x98] sm:$0xff] %v2344
        %2377 = vst [vmem:[%s244 + $0xa0] sm:$0xff] %v2345
        %2378 = vst [vmem:[%s244 + $0xa8] sm:$0xff] %v2346
        %2379 = vst [vmem:[%s244 + $0xb0] sm:$0xff] %v2347
        %2380 = vst [vmem:[%s244 + $0xb8] sm:$0xff] %v2348
        %2381 = vst [vmem:[%s244 + $0xc0] sm:$0xff] %v2349
        %2382 = vst [vmem:[%s244 + $0xc8] sm:$0xff] %v2350
        %2383 = vst [vmem:[%s244 + $0xd0] sm:$0xff] %v2351
        %2384 = vst [vmem:[%s244 + $0xd8] sm:$0xff] %v2352
        %2385 = vst [vmem:[%s244 + $0xe0] sm:$0xff] %v2353
        %2386 = vst [vmem:[%s244 + $0xe8] sm:$0xff] %v2354
        %2387 = vst [vmem:[%s244 + $0xf0] sm:$0xff] %v2355
        %2388 = vst [vmem:[%s244 + $0xf8] sm:$0xff] %v2356
        %s2389 = sand.u32 %s119, 1
        %s2390 = scalar_lea.sflag [#allocation5], %s2389
        %s2391 = sand.u32 %s119, 1
        %s2392 = smul.addr %s2391, 256
        %s2393 = scalar_lea.vmem [#allocation9], %s2392
        // Predicated region
        $region49: #{tpu_custom_call.1} parent=35 // pred_check
          %p2394 = pneg %p129
        $region50: #{tpu_custom_call.1} parent=35 // pred_check_branch
          %2396 = sbr.rel (%p2394) target = $region52
        $region51: #{tpu_custom_call.1} parent=35 // pred_region
          %s2397 = smul.u32 32, %s22
          %s2399 = ssub.s32 4096, 4096
          %2400 = vsyncadd %s2390, %s2399
          %s2401 = smul.addr %s2397, 128
          %s2402 = scalar_lea.hbm %s4, %s2401
          %s2403 = sshll.u32 %s2393, 4
          %s2404 = int_to_ptr.vmem [resolvable:$true] %s2403
          %2409 = dma.vmem_to_hbm [thread:$0]  %s2404, 4096, %s2402, %s2390, 128, 128, 8
        $region52: #{tpu_custom_call.1} parent=35 // pred_fallthru
          _
      $region36: #{tpu_custom_call.1} parent=5 // pred_fallthru
        _
      %p2410 = scmp.le.s32.totalorder 2, %s17
      // Predicated region
      $region53: #{tpu_custom_call.1} parent=5 // pred_check
        %p2411 = pneg %p2410
      $region54: #{tpu_custom_call.1} parent=5 // pred_check_branch
        %2413 = sbr.rel (%p2411) target = $region56
      $region55: #{tpu_custom_call.1} parent=5 // pred_region
        %s2414 = ssub.s32 %s17, 2
        // Predicated region
        $region57: #{tpu_custom_call.1} parent=55 // pred_check
          %p2415 = pneg %p135
        $region58: #{tpu_custom_call.1} parent=55 // pred_check_branch
          %2417 = sbr.rel (%p2415) target = $region60
        $region59: #{tpu_custom_call.1} parent=55 // pred_region
          %s2418 = sand.u32 %s120, 1
          %s2419 = scalar_lea.sflag [#allocation5], %s2418
          %s2420 = sand.u32 %s120, 1
          %s2421 = smul.addr %s2420, 256
          %s2422 = scalar_lea.vmem [#allocation9], %s2421
          %2423 = dma.done %s2419, 4096
        $region60: #{tpu_custom_call.1} parent=55 // pred_fallthru
          _
      $region56: #{tpu_custom_call.1} parent=5 // pred_fallthru
        _
    $region6: #{tpu_custom_call.1} parent=1 // loop_footer
      %s21 = sadd.s32 1, %s17
    $region7: #{tpu_custom_call.1} parent=1 // loop_footer_branch
      %16 = sbr.rel target = $region3
    $region8: #{tpu_custom_call.1} parent=1 // loop_exit
      _
    %2424 = vsyncpa [#allocation4], 1
    %s2425 = scalar_lea.sflag [#allocation4], 1
    %2426 = vsyncpa %s2425, 1
    %2427 = vsyncpa [#allocation7], 1
    %2428 = vsyncpa [#allocation5], 1
    %s2429 = scalar_lea.sflag [#allocation5], 1
    %2430 = vsyncpa %s2429, 1

</llo_original>
